<compile_context>
chip_gen: v5e
topology: v5e:2x2
jax: 0.10.0
libtpu: 0.0.40
codegen_flags: <defaults>
</compile_context>

<pallas_src>
import functools

import jax
import jax.numpy as jnp
from jax.experimental import pallas as pl
from jax.experimental.pallas import tpu as pltpu


# ----------------------------------------------------------------------------
# Pass 1: conv3x3 + BN + leaky_relu per row tile, plus per-tile channel sums.
# ----------------------------------------------------------------------------
def arm_conv_kernel(body_ref, top_ref, bot_ref, w3_ref, s1_ref, b1_ref,
                    feat_ref, psum_ref):
    """One (batch, row-tile) block per grid step.

    body_ref : (1, TH, W, Cin)   rows owned by this tile
    top_ref  : (1, 1,  W, Cin)   row just above the tile (masked when i == 0)
    bot_ref  : (1, 1,  W, Cin)   row just below the tile (masked when i == last)
    w3_ref   : (3, 3*Cin, Cout)  conv weight, per-ky (kx, cin)-major slabs
    s1_ref   : (1, Cout)         folded BN scale
    b1_ref   : (1, Cout)         folded BN bias
    feat_ref : (1, TH, W, Cout)  activated conv output
    psum_ref : (1, 1, 1, Cout)   per-tile channel sums (for global avg pool)
    """
    _, TH, W, Cin = body_ref.shape
    Cout = w3_ref.shape[-1]
    i = pl.program_id(1)
    n_h = pl.num_programs(1)

    # Assemble the zero-padded (TH+2, W+2, Cin) input band for this tile.
    # Halo rows come from adjacent BlockSpec views; at the image boundary the
    # (clamped) fetched row is zeroed by the scalar mask.
    top = top_ref[0] * (i > 0).astype(jnp.float32)
    bot = bot_ref[0] * (i < n_h - 1).astype(jnp.float32)
    band = jnp.concatenate([top, body_ref[0], bot], axis=0)        # (TH+2, W, Cin)
    zcol = jnp.zeros((TH + 2, 1, Cin), jnp.float32)
    band = jnp.concatenate([zcol, band, zcol], axis=1)             # (TH+2, W+2, Cin)

    # 3x3 conv as 3 matmuls: the three kx taps are fused along the contraction
    # axis (K = 3*Cin), so each MXU pass is deeper and only 3 patch
    # materializations happen instead of 9.
    acc = jnp.zeros((TH * W, Cout), jnp.float32)
    for ky in range(3):
        rows = band[ky:ky + TH]                                    # (TH, W+2, Cin)
        patch = jnp.concatenate(
            [rows[:, 0:W, :], rows[:, 1:W + 1, :], rows[:, 2:W + 2, :]],
            axis=-1).reshape(TH * W, 3 * Cin)
        acc = acc + jnp.dot(patch, w3_ref[ky],
                            preferred_element_type=jnp.float32)

    # Folded BatchNorm (inference) + leaky_relu(0.01).
    feat = acc * s1_ref[...] + b1_ref[...]
    feat = jnp.where(feat > 0, feat, 0.01 * feat)

    feat_ref[0] = feat.reshape(TH, W, Cout).astype(feat_ref.dtype)
    # Partial global-average-pool: channel sums of this tile only.
    psum_ref[0, 0] = jnp.sum(feat, axis=0, keepdims=True)


# ----------------------------------------------------------------------------
# Pass 2: attention (GAP -> 1x1 conv -> BN -> sigmoid) and channel re-weighting.
# ----------------------------------------------------------------------------
def arm_scale_kernel(psum_ref, w1_ref, s2_ref, b2_ref, feat_ref, out_ref, *,
                     inv_hw):
    """out = feat * sigmoid(BN(conv1x1(global_avg_pool(feat)))).

    psum_ref : (1, n_h, 1, Cout)  per-tile channel sums from pass 1
    w1_ref   : (Cout, Cout)       1x1 attention conv weight (in, out)
    s2_ref   : (1, Cout)          folded BN scale (bn_atten)
    b2_ref   : (1, Cout)          folded BN bias  (bn_atten)
    feat_ref : (1, TH, W, Cout)
    out_ref  : (1, TH, W, Cout)   aliased onto `feat` in HBM (in-place scale)
    """
    Cout = w1_ref.shape[0]
    pooled = jnp.sum(psum_ref[0, :, 0, :], axis=0, keepdims=True) * inv_hw
    atten = jnp.dot(pooled, w1_ref[...], preferred_element_type=jnp.float32)
    atten = jax.nn.sigmoid(atten * s2_ref[...] + b2_ref[...])      # (1, Cout)
    out_ref[0] = (feat_ref[0] * atten.reshape(1, 1, Cout)).astype(out_ref.dtype)


# ----------------------------------------------------------------------------
# Tiling / VMEM helpers.
# ----------------------------------------------------------------------------
def _pick_tile_h(H, W, Cin, Cout, budget_bytes=8 << 20):
    """Largest row tile (multiple of 8, dividing H) fitting the VMEM budget."""
    per_row = 4 * W * (6 * Cin + 6 * Cout) + 1024
    max_rows = max(8, budget_bytes // per_row)
    if H <= max_rows:
        return H
    cands = [t for t in range(8, H, 8) if H % t == 0 and t <= max_rows]
    return max(cands) if cands else H


def _vmem_limit_bytes(TH, W, Cin, Cout):
    """Conservative per-step VMEM estimate -> explicit compiler limit."""
    words = (
        2 * TH * W * Cin            # body input blocks (double-buffered)
        + 4 * W * Cin               # halo row blocks
        + 4 * TH * W * Cout         # feat / out blocks (double-buffered)
        + (TH + 2) * (W + 2) * Cin  # assembled padded band (live value)
        + 3 * TH * W * Cin          # kx-fused patch (live value)
        + 2 * TH * W * Cout         # accumulator + activated feat (live)
        + 9 * Cin * Cout + Cout * Cout + 8 * Cout
    )
    est = 4 * words
    return int(min(48 << 20, max(8 << 20, 2 * est)))


# ----------------------------------------------------------------------------
# Wrapper.
# ----------------------------------------------------------------------------
def attention_refinement_module(x_nchw, params, tile_h=None):
    """x_nchw: (N, Cin, H, W) float32 -> (N, Cout, H, W) float32."""
    w3_hwio, s1, b1, w1, s2, b2 = params
    N, Cin, H, W = x_nchw.shape
    Cout = w3_hwio.shape[-1]

    # NCHW -> NHWC so channels sit on the lane axis for the MXU matmuls.
    # No zero-padding here: halos are fetched by the kernel itself.
    # TODO(synk): fold this transpose (and the inverse below) into the kernel
    # DMAs to remove one full HBM round-trip of the activations.
    x = jnp.transpose(x_nchw, (0, 2, 3, 1)).astype(jnp.float32)

    TH = tile_h if tile_h is not None else _pick_tile_h(H, W, Cin, Cout)
    assert H % TH == 0 and (TH % 8 == 0 or TH == H), (H, TH)
    n_h = H // TH

    w3 = w3_hwio.reshape(3, 3 * Cin, Cout)          # per-ky, (kx, cin)-major
    s1_2d = s1.reshape(1, Cout)
    b1_2d = b1.reshape(1, Cout)
    s2_2d = s2.reshape(1, Cout)
    b2_2d = b2.reshape(1, Cout)

    cparams = pltpu.CompilerParams(
        dimension_semantics=("parallel", "parallel"),
        vmem_limit_bytes=_vmem_limit_bytes(TH, W, Cin, Cout))

    # ---- pass 1: conv + BN + act, and per-tile pooled partial sums ----
    feat, psums = pl.pallas_call(
        arm_conv_kernel,
        grid=(N, n_h),
        in_specs=[
            pl.BlockSpec((1, TH, W, Cin), lambda n, i: (n, i, 0, 0)),
            pl.BlockSpec((1, 1, W, Cin),
                         lambda n, i: (n, jnp.maximum(i * TH - 1, 0), 0, 0)),
            pl.BlockSpec((1, 1, W, Cin),
                         lambda n, i: (n, jnp.minimum((i + 1) * TH, H - 1), 0, 0)),
            pl.BlockSpec((3, 3 * Cin, Cout), lambda n, i: (0, 0, 0)),
            pl.BlockSpec((1, Cout), lambda n, i: (0, 0)),
            pl.BlockSpec((1, Cout), lambda n, i: (0, 0)),
        ],
        out_specs=[
            pl.BlockSpec((1, TH, W, Cout), lambda n, i: (n, i, 0, 0)),
            pl.BlockSpec((1, 1, 1, Cout), lambda n, i: (n, i, 0, 0)),
        ],
        out_shape=[
            jax.ShapeDtypeStruct((N, H, W, Cout), jnp.float32),
            jax.ShapeDtypeStruct((N, n_h, 1, Cout), jnp.float32),
        ],
        compiler_params=cparams,
    )(x, x, x, w3, s1_2d, b1_2d)

    # ---- pass 2: attention + channel re-weighting (in place over feat) ----
    out_nhwc = pl.pallas_call(
        functools.partial(arm_scale_kernel, inv_hw=1.0 / float(H * W)),
        grid=(N, n_h),
        in_specs=[
            pl.BlockSpec((1, n_h, 1, Cout), lambda n, i: (n, 0, 0, 0)),
            pl.BlockSpec((Cout, Cout), lambda n, i: (0, 0)),
            pl.BlockSpec((1, Cout), lambda n, i: (0, 0)),
            pl.BlockSpec((1, Cout), lambda n, i: (0, 0)),
            pl.BlockSpec((1, TH, W, Cout), lambda n, i: (n, i, 0, 0)),
        ],
        out_specs=pl.BlockSpec((1, TH, W, Cout), lambda n, i: (n, i, 0, 0)),
        out_shape=jax.ShapeDtypeStruct((N, H, W, Cout), jnp.float32),
        input_output_aliases={4: 0},
        compiler_params=cparams,
    )(psums, w1, s2_2d, b2_2d, feat)

    return jnp.transpose(out_nhwc, (0, 3, 1, 2))    # back to NCHW


# ----------------------------------------------------------------------------
# Synthetic parameters and pure-JAX reference.
# ----------------------------------------------------------------------------
def make_params(key, cin, cout):
    """Deterministic synthetic parameters (shapes per the module __init__)."""
    k = jax.random.split(key, 8)
    w3 = jax.random.normal(k[0], (3, 3, cin, cout), jnp.float32) * (2.0 / (9 * cin)) ** 0.5
    g1 = 1.0 + 0.1 * jax.random.normal(k[1], (cout,), jnp.float32)
    be1 = 0.1 * jax.random.normal(k[2], (cout,), jnp.float32)
    m1 = 0.1 * jax.random.normal(k[3], (cout,), jnp.float32)
    v1 = jnp.abs(jax.random.normal(k[4], (cout,), jnp.float32)) + 0.5
    eps = 1e-5
    s1 = g1 / jnp.sqrt(v1 + eps)
    b1 = be1 - m1 * s1
    w1 = jax.random.normal(k[5], (cout, cout), jnp.float32) * (2.0 / cout) ** 0.5
    g2 = 1.0 + 0.1 * jax.random.normal(k[6], (cout,), jnp.float32)
    be2 = 0.1 * jax.random.normal(k[7], (cout,), jnp.float32)
    s2 = g2 / jnp.sqrt(1.0 + eps)       # running_var=1, running_mean=0
    b2 = be2
    return (w3, s1, b1, w1, s2, b2)


def reference_forward(x_nchw, params):
    """Pure-JAX reference of the same forward pass (for verification)."""
    w3, s1, b1, w1, s2, b2 = params
    x = jnp.transpose(x_nchw, (0, 2, 3, 1))
    feat = jax.lax.conv_general_dilated(
        x, w3, window_strides=(1, 1), padding="SAME",
        dimension_numbers=("NHWC", "HWIO", "NHWC"))
    feat = feat * s1 + b1
    feat = jnp.where(feat > 0, feat, 0.01 * feat)
    atten = jnp.mean(feat, axis=(1, 2), keepdims=True)
    atten = jnp.einsum("nhwc,cd->nhwd", atten, w1)
    atten = jax.nn.sigmoid(atten * s2 + b2)
    out = feat * atten
    return jnp.transpose(out, (0, 3, 1, 2))


if __name__ == "__main__":
    key = jax.random.PRNGKey(0)
    kx, kp = jax.random.split(key)

    N, Cin, Cout, H, W = 2, 4, 8, 16, 16
    x = jax.random.normal(kx, (N, Cin, H, W), jnp.float32)
    params = make_params(kp, Cin, Cout)

    ref = jax.block_until_ready(reference_forward(x, params))

    # Multi-row-tile path (2 tiles of 8 rows each).
    out = jax.block_until_ready(attention_refinement_module(x, params, tile_h=8))
    assert out.shape == (N, Cout, H, W)
    assert jnp.allclose(out, ref, atol=1e-4, rtol=1e-4), "tiled path mismatch vs JAX reference"

    # Degenerate single-tile path (tile_h == H).
    out1 = jax.block_until_ready(attention_refinement_module(x, params, tile_h=16))
    assert jnp.allclose(out1, ref, atol=1e-4, rtol=1e-4), "single-tile path mismatch vs JAX reference"

    print("KERNEL_OK")
</pallas_src>

<mosaic_0001>
module attributes {stable_mosaic.version = 11 : i64} {
  func.func @arm_conv_kernel(%arg0: i32, %arg1: i32, %arg2: memref<1x8x16x4xf32, #tpu.memory_space<vmem>>, %arg3: memref<1x1x16x4xf32, #tpu.memory_space<vmem>>, %arg4: memref<1x1x16x4xf32, #tpu.memory_space<vmem>>, %arg5: memref<3x12x8xf32, #tpu.memory_space<vmem>>, %arg6: memref<1x8xf32, #tpu.memory_space<vmem>>, %arg7: memref<1x8xf32, #tpu.memory_space<vmem>>, %arg8: memref<1x8x16x8xf32, #tpu.memory_space<vmem>>, %arg9: memref<1x1x1x8xf32, #tpu.memory_space<vmem>>) attributes {dimension_semantics = [#tpu.dimension_semantics<parallel>, #tpu.dimension_semantics<parallel>], iteration_bounds = array<i64: 2, 2>, scalar_prefetch = 0 : i64, scratch_operands = 0 : i64, tpu.core_type = #tpu.core_type<tc>, window_params = [{transform_indices = @transform_0, window_bounds = array<i64: 1, 8, 16, 4>}, {transform_indices = @transform_1, window_bounds = array<i64: 1, 1, 16, 4>}, {transform_indices = @transform_2, window_bounds = array<i64: 1, 1, 16, 4>}, {pipeline_mode = #tpu.pipeline_mode<synchronous>, transform_indices = @transform_3, window_bounds = array<i64: 3, 12, 8>}, {pipeline_mode = #tpu.pipeline_mode<synchronous>, transform_indices = @transform_4, window_bounds = array<i64: 1, 8>}, {pipeline_mode = #tpu.pipeline_mode<synchronous>, transform_indices = @transform_5, window_bounds = array<i64: 1, 8>}, {transform_indices = @transform_6, window_bounds = array<i64: 1, 8, 16, 8>}, {transform_indices = @transform_7, window_bounds = array<i64: 1, 1, 1, 8>}]} {
    %c0 = arith.constant 0 : index
    %c0_0 = arith.constant 0 : index
    %c0_1 = arith.constant 0 : index
    %c0_2 = arith.constant 0 : index
    %0 = vector.load %arg3[%c0, %c0_0, %c0_1, %c0_2] : memref<1x1x16x4xf32, #tpu.memory_space<vmem>>, vector<1x1x16x4xf32>
    %1 = vector.shape_cast %0 : vector<1x1x16x4xf32> to vector<1x16x4xf32>
    %c0_i32 = arith.constant 0 : i32
    %2 = arith.cmpi sgt, %arg1, %c0_i32 : i32
    %3 = arith.extui %2 : i1 to i32
    %4 = arith.sitofp %3 : i32 to f32
    %5 = vector.broadcast %4 : f32 to vector<1x16x4xf32>
    %6 = arith.mulf %1, %5 : vector<1x16x4xf32>
    %c0_3 = arith.constant 0 : index
    %c0_4 = arith.constant 0 : index
    %c0_5 = arith.constant 0 : index
    %c0_6 = arith.constant 0 : index
    %7 = vector.load %arg4[%c0_3, %c0_4, %c0_5, %c0_6] : memref<1x1x16x4xf32, #tpu.memory_space<vmem>>, vector<1x1x16x4xf32>
    %8 = vector.shape_cast %7 : vector<1x1x16x4xf32> to vector<1x16x4xf32>
    %c1_i32 = arith.constant 1 : i32
    %9 = arith.cmpi slt, %arg1, %c1_i32 : i32
    %10 = arith.extui %9 : i1 to i32
    %11 = arith.sitofp %10 : i32 to f32
    %12 = vector.broadcast %11 : f32 to vector<1x16x4xf32>
    %13 = arith.mulf %8, %12 : vector<1x16x4xf32>
    %c0_7 = arith.constant 0 : index
    %c0_8 = arith.constant 0 : index
    %c0_9 = arith.constant 0 : index
    %c0_10 = arith.constant 0 : index
    %14 = vector.load %arg2[%c0_7, %c0_8, %c0_9, %c0_10] : memref<1x8x16x4xf32, #tpu.memory_space<vmem>>, vector<1x8x16x4xf32>
    %15 = vector.shape_cast %14 : vector<1x8x16x4xf32> to vector<8x16x4xf32>
    %16 = tpu.concatenate %6, %15, %13 in 0 : vector<1x16x4xf32>, vector<8x16x4xf32>, vector<1x16x4xf32> -> vector<10x16x4xf32>
    %cst = arith.constant 0.000000e+00 : f32
    %17 = vector.broadcast %cst : f32 to vector<10x1x4xf32>
    %18 = tpu.concatenate %17, %16, %17 in 1 : vector<10x1x4xf32>, vector<10x16x4xf32>, vector<10x1x4xf32> -> vector<10x18x4xf32>
    %cst_11 = arith.constant 0.000000e+00 : f32
    %19 = vector.broadcast %cst_11 : f32 to vector<128x8xf32>
    %20 = vector.extract_strided_slice %18 {offsets = [0, 0, 0], sizes = [8, 18, 4], strides = [1, 1, 1]} : vector<10x18x4xf32> to vector<8x18x4xf32>
    %21 = vector.extract_strided_slice %20 {offsets = [0, 0, 0], sizes = [8, 16, 4], strides = [1, 1, 1]} : vector<8x18x4xf32> to vector<8x16x4xf32>
    %22 = vector.extract_strided_slice %20 {offsets = [0, 1, 0], sizes = [8, 16, 4], strides = [1, 1, 1]} : vector<8x18x4xf32> to vector<8x16x4xf32>
    %23 = vector.extract_strided_slice %20 {offsets = [0, 2, 0], sizes = [8, 16, 4], strides = [1, 1, 1]} : vector<8x18x4xf32> to vector<8x16x4xf32>
    %24 = tpu.concatenate %21, %22, %23 in 2 : vector<8x16x4xf32>, vector<8x16x4xf32>, vector<8x16x4xf32> -> vector<8x16x12xf32>
    %25 = vector.shape_cast %24 : vector<8x16x12xf32> to vector<128x12xf32>
    %c0_12 = arith.constant 0 : index
    %c0_13 = arith.constant 0 : index
    %c0_14 = arith.constant 0 : index
    %26 = vector.load %arg5[%c0_12, %c0_13, %c0_14] : memref<3x12x8xf32, #tpu.memory_space<vmem>>, vector<1x12x8xf32>
    %27 = vector.shape_cast %26 : vector<1x12x8xf32> to vector<12x8xf32>
    %cst_15 = arith.constant dense<0.000000e+00> : vector<128x8xf32>
    %28 = tpu.matmul %25, %27, %cst_15 {dimension_numbers = #tpu.dot_dimension_numbers<[1], [0], [0], [1], [0, 0, 1, 1], [], []>} : vector<128x12xf32>, vector<12x8xf32>, vector<128x8xf32> -> vector<128x8xf32>
    %29 = arith.addf %19, %28 : vector<128x8xf32>
    %30 = vector.extract_strided_slice %18 {offsets = [1, 0, 0], sizes = [8, 18, 4], strides = [1, 1, 1]} : vector<10x18x4xf32> to vector<8x18x4xf32>
    %31 = vector.extract_strided_slice %30 {offsets = [0, 0, 0], sizes = [8, 16, 4], strides = [1, 1, 1]} : vector<8x18x4xf32> to vector<8x16x4xf32>
    %32 = vector.extract_strided_slice %30 {offsets = [0, 1, 0], sizes = [8, 16, 4], strides = [1, 1, 1]} : vector<8x18x4xf32> to vector<8x16x4xf32>
    %33 = vector.extract_strided_slice %30 {offsets = [0, 2, 0], sizes = [8, 16, 4], strides = [1, 1, 1]} : vector<8x18x4xf32> to vector<8x16x4xf32>
    %34 = tpu.concatenate %31, %32, %33 in 2 : vector<8x16x4xf32>, vector<8x16x4xf32>, vector<8x16x4xf32> -> vector<8x16x12xf32>
    %35 = vector.shape_cast %34 : vector<8x16x12xf32> to vector<128x12xf32>
    %c1 = arith.constant 1 : index
    %c0_16 = arith.constant 0 : index
    %c0_17 = arith.constant 0 : index
    %36 = vector.load %arg5[%c1, %c0_16, %c0_17] : memref<3x12x8xf32, #tpu.memory_space<vmem>>, vector<1x12x8xf32>
    %37 = vector.shape_cast %36 : vector<1x12x8xf32> to vector<12x8xf32>
    %cst_18 = arith.constant dense<0.000000e+00> : vector<128x8xf32>
    %38 = tpu.matmul %35, %37, %cst_18 {dimension_numbers = #tpu.dot_dimension_numbers<[1], [0], [0], [1], [0, 0, 1, 1], [], []>} : vector<128x12xf32>, vector<12x8xf32>, vector<128x8xf32> -> vector<128x8xf32>
    %39 = arith.addf %29, %38 : vector<128x8xf32>
    %40 = vector.extract_strided_slice %18 {offsets = [2, 0, 0], sizes = [8, 18, 4], strides = [1, 1, 1]} : vector<10x18x4xf32> to vector<8x18x4xf32>
    %41 = vector.extract_strided_slice %40 {offsets = [0, 0, 0], sizes = [8, 16, 4], strides = [1, 1, 1]} : vector<8x18x4xf32> to vector<8x16x4xf32>
    %42 = vector.extract_strided_slice %40 {offsets = [0, 1, 0], sizes = [8, 16, 4], strides = [1, 1, 1]} : vector<8x18x4xf32> to vector<8x16x4xf32>
    %43 = vector.extract_strided_slice %40 {offsets = [0, 2, 0], sizes = [8, 16, 4], strides = [1, 1, 1]} : vector<8x18x4xf32> to vector<8x16x4xf32>
    %44 = tpu.concatenate %41, %42, %43 in 2 : vector<8x16x4xf32>, vector<8x16x4xf32>, vector<8x16x4xf32> -> vector<8x16x12xf32>
    %45 = vector.shape_cast %44 : vector<8x16x12xf32> to vector<128x12xf32>
    %c2 = arith.constant 2 : index
    %c0_19 = arith.constant 0 : index
    %c0_20 = arith.constant 0 : index
    %46 = vector.load %arg5[%c2, %c0_19, %c0_20] : memref<3x12x8xf32, #tpu.memory_space<vmem>>, vector<1x12x8xf32>
    %47 = vector.shape_cast %46 : vector<1x12x8xf32> to vector<12x8xf32>
    %cst_21 = arith.constant dense<0.000000e+00> : vector<128x8xf32>
    %48 = tpu.matmul %45, %47, %cst_21 {dimension_numbers = #tpu.dot_dimension_numbers<[1], [0], [0], [1], [0, 0, 1, 1], [], []>} : vector<128x12xf32>, vector<12x8xf32>, vector<128x8xf32> -> vector<128x8xf32>
    %49 = arith.addf %39, %48 : vector<128x8xf32>
    %c0_22 = arith.constant 0 : index
    %c0_23 = arith.constant 0 : index
    %50 = vector.load %arg6[%c0_22, %c0_23] : memref<1x8xf32, #tpu.memory_space<vmem>>, vector<1x8xf32>
    %51 = vector.broadcast %50 : vector<1x8xf32> to vector<128x8xf32>
    %52 = arith.mulf %49, %51 : vector<128x8xf32>
    %c0_24 = arith.constant 0 : index
    %c0_25 = arith.constant 0 : index
    %53 = vector.load %arg7[%c0_24, %c0_25] : memref<1x8xf32, #tpu.memory_space<vmem>>, vector<1x8xf32>
    %54 = vector.broadcast %53 : vector<1x8xf32> to vector<128x8xf32>
    %55 = arith.addf %52, %54 : vector<128x8xf32>
    %cst_26 = arith.constant 0.000000e+00 : f32
    %56 = vector.broadcast %cst_26 : f32 to vector<128x8xf32>
    %57 = arith.cmpf ogt, %55, %56 : vector<128x8xf32>
    %cst_27 = arith.constant 0.00999999977 : f32
    %58 = vector.broadcast %cst_27 : f32 to vector<128x8xf32>
    %59 = arith.mulf %58, %55 : vector<128x8xf32>
    %60 = arith.select %57, %55, %59 : vector<128x8xi1>, vector<128x8xf32>
    %61 = vector.shape_cast %60 : vector<128x8xf32> to vector<8x16x8xf32>
    %c0_28 = arith.constant 0 : index
    %c0_29 = arith.constant 0 : index
    %c0_30 = arith.constant 0 : index
    %c0_31 = arith.constant 0 : index
    %62 = vector.load %arg8[%c0_28, %c0_29, %c0_30, %c0_31] : memref<1x8x16x8xf32, #tpu.memory_space<vmem>>, vector<1x8x16x8xf32>
    %63 = vector.shape_cast %62 : vector<1x8x16x8xf32> to vector<8x16x8xf32>
    %64 = vector.shape_cast %61 : vector<8x16x8xf32> to vector<1x8x16x8xf32>
    tpu.vector_store %arg8[%c0_28, %c0_29, %c0_30, %c0_31], %64 {strides = array<i32>} : memref<1x8x16x8xf32, #tpu.memory_space<vmem>>, vector<1x8x16x8xf32>,
    %cst_32 = arith.constant dense<0.000000e+00> : vector<8xf32>
    %65 = vector.multi_reduction <add>, %60, %cst_32 [0] : vector<128x8xf32> to vector<8xf32>
    %66 = vector.shape_cast %65 : vector<8xf32> to vector<1x8xf32>
    %c0_33 = arith.constant 0 : index
    %c0_34 = arith.constant 0 : index
    %c0_35 = arith.constant 0 : index
    %c0_36 = arith.constant 0 : index
    %67 = vector.load %arg9[%c0_33, %c0_34, %c0_35, %c0_36] : memref<1x1x1x8xf32, #tpu.memory_space<vmem>>, vector<1x1x1x8xf32>
    %68 = vector.shape_cast %67 : vector<1x1x1x8xf32> to vector<1x8xf32>
    %69 = vector.shape_cast %66 : vector<1x8xf32> to vector<1x1x1x8xf32>
    tpu.vector_store %arg9[%c0_33, %c0_34, %c0_35, %c0_36], %69 {strides = array<i32>} : memref<1x1x1x8xf32, #tpu.memory_space<vmem>>, vector<1x1x1x8xf32>,
    return
  }
  func.func @transform_0(%arg0: i32, %arg1: i32) -> (i32, i32, i32, i32) {
    %c0_i32 = arith.constant 0 : i32
    %c0_i32_0 = arith.constant 0 : i32
    %c0_i32_1 = arith.constant 0 : i32
    return %arg0, %arg1, %c0_i32, %c0_i32_0 : i32, i32, i32, i32
  }
  func.func @transform_1(%arg0: i32, %arg1: i32) -> (i32, i32, i32, i32) {
    %c8_i32 = arith.constant 8 : i32
    %0 = arith.muli %arg1, %c8_i32 : i32
    %c1_i32 = arith.constant 1 : i32
    %1 = arith.subi %0, %c1_i32 : i32
    %c0_i32 = arith.constant 0 : i32
    %2 = arith.maxsi %1, %c0_i32 : i32
    %c0_i32_0 = arith.constant 0 : i32
    %c0_i32_1 = arith.constant 0 : i32
    %c0_i32_2 = arith.constant 0 : i32
    return %arg0, %2, %c0_i32_0, %c0_i32_1 : i32, i32, i32, i32
  }
  func.func @transform_2(%arg0: i32, %arg1: i32) -> (i32, i32, i32, i32) {
    %c1_i32 = arith.constant 1 : i32
    %0 = arith.addi %arg1, %c1_i32 : i32
    %c8_i32 = arith.constant 8 : i32
    %1 = arith.muli %0, %c8_i32 : i32
    %c15_i32 = arith.constant 15 : i32
    %2 = arith.minsi %1, %c15_i32 : i32
    %c0_i32 = arith.constant 0 : i32
    %c0_i32_0 = arith.constant 0 : i32
    %c0_i32_1 = arith.constant 0 : i32
    return %arg0, %2, %c0_i32, %c0_i32_0 : i32, i32, i32, i32
  }
  func.func @transform_3(%arg0: i32, %arg1: i32) -> (i32, i32, i32) {
    %c0_i32 = arith.constant 0 : i32
    %c0_i32_0 = arith.constant 0 : i32
    %c0_i32_1 = arith.constant 0 : i32
    %c0_i32_2 = arith.constant 0 : i32
    return %c0_i32, %c0_i32_0, %c0_i32_1 : i32, i32, i32
  }
  func.func @transform_4(%arg0: i32, %arg1: i32) -> (i32, i32) {
    %c0_i32 = arith.constant 0 : i32
    %c0_i32_0 = arith.constant 0 : i32
    %c0_i32_1 = arith.constant 0 : i32
    return %c0_i32, %c0_i32_0 : i32, i32
  }
  func.func @transform_5(%arg0: i32, %arg1: i32) -> (i32, i32) {
    %c0_i32 = arith.constant 0 : i32
    %c0_i32_0 = arith.constant 0 : i32
    %c0_i32_1 = arith.constant 0 : i32
    return %c0_i32, %c0_i32_0 : i32, i32
  }
  func.func @transform_6(%arg0: i32, %arg1: i32) -> (i32, i32, i32, i32) {
    %c0_i32 = arith.constant 0 : i32
    %c0_i32_0 = arith.constant 0 : i32
    %c0_i32_1 = arith.constant 0 : i32
    return %arg0, %arg1, %c0_i32, %c0_i32_0 : i32, i32, i32, i32
  }
  func.func @transform_7(%arg0: i32, %arg1: i32) -> (i32, i32, i32, i32) {
    %c0_i32 = arith.constant 0 : i32
    %c0_i32_0 = arith.constant 0 : i32
    %c0_i32_1 = arith.constant 0 : i32
    return %arg0, %arg1, %c0_i32, %c0_i32_0 : i32, i32, i32, i32
  }
}

</mosaic_0001>

<llo_original>
// kernel: tpu_custom_call.1
$region0: #{tpu_custom_call.1}
  #allocation0 [shape = 'u32[]', space=smem, size = 0x4, offset = 0x4, fixed_abs, tag = 'smem constant byte address 0x4 - core index']
  #allocation1 [shape = 'u32[72,128]{1,0:T(1,128)}', space=vmem, size = 0x9000, scoped, tag = 'internal scratch']
  %s0 = inlined_call_operand.vmem [shape: f32[2,16,16,4], index: 0, kind: input, shape index: {}]
  %s1 = inlined_call_operand.vmem [shape: f32[2,16,16,4], index: 1, kind: input, shape index: {}]
  %s2 = inlined_call_operand.vmem [shape: f32[2,16,16,4], index: 2, kind: input, shape index: {}]
  %s3 = inlined_call_operand.vmem [shape: f32[3,12,8], index: 3, kind: input, shape index: {}]
  %s4 = inlined_call_operand.vmem [shape: f32[1,8], index: 4, kind: input, shape index: {}]
  %s5 = inlined_call_operand.vmem [shape: f32[1,8], index: 5, kind: input, shape index: {}]
  %s6 = inlined_call_operand.vmem [shape: f32[2,16,16,8], index: 6, kind: output, shape index: {0}]
  %s7 = inlined_call_operand.hbm [shape: f32[2,2,1,8], index: 7, kind: output, shape index: {1}]
  %8 = xla_tuple %s6, %s7
  %s9 = sld [smem:[#allocation0]]
  $region65: #{tpu_custom_call.1} parent=0
    _
  %s11 = ssub.s32 1, %s9
  %s12 = scalar_select 0, %s11, %s9
  $region1: #{tpu_custom_call.1} parent=0
    #allocation2 [shape = 'u8[1024]{0}', space=vmem, size = 0x400, scoped, tag = 'output window, operand 1']
    #allocation3 [shape = 's32[2]{0}', space=sflag, size = 0x8, scoped, tag = 'scoped memory for tpu_custom_call.1']
    %13 = vsyncpa [#allocation3], 0
    %s14 = scalar_lea.sflag [#allocation3], 1
    %15 = vsyncpa %s14, 0
    loop: start=0, step=1, limit=6
    $region2: #{tpu_custom_call.1} parent=1 // loop_pre_header
      _
    $region3: #{tpu_custom_call.1} parent=1 // loop_header
      %s17 = sphi 0, %s21
      %p18 = scmp.ge.s32.totalorder %s17, 6
      %s24 = sphi 0, %s36
      %s25 = sphi 0, %s32
      %s26 = sphi 0, %s24
      %s27 = sphi 0, %s25
      %s28 = sphi 0, %s26
      %s29 = sphi 0, %s27
      %s41 = sphi 0, %s43
      %s44 = sphi 0, %s41
      %s45 = sphi 0, %s44
      %s61 = sphi 0, %s45
      %s77 = sphi 0, %s79
      %s80 = sphi 0, %s77
      %s81 = sphi 0, %s80
      %s97 = sphi 0, %s81
      %s113 = sphi 0, %s115
      %s116 = sphi 0, %s113
      %s117 = sphi 0, %s116
      %s133 = sphi 0, %s117
      %s137 = sphi 0, %s137
      %s139 = sphi 0, %s137
      %s140 = sphi 0, %s139
      %s154 = sphi 0, %s140
      %s158 = sphi 0, %s158
      %s160 = sphi 0, %s158
      %s161 = sphi 0, %s160
      %s175 = sphi 0, %s161
      %s179 = sphi 0, %s179
      %s181 = sphi 0, %s179
      %s182 = sphi 0, %s181
      %s196 = sphi 0, %s182
      %s204 = sphi 0, %s206
      %s207 = sphi 0, %s204
      %s208 = sphi 0, %s207
      %s224 = sphi 0, %s208
      %s232 = sphi 0, %s234
      %s235 = sphi 0, %s232
      %s236 = sphi 0, %s235
      %s252 = sphi 0, %s236
    $region4: #{tpu_custom_call.1} parent=1 // loop_header_branch
      %20 = sbr.rel (%p18) target = $region8
    $region5: #{tpu_custom_call.1} parent=1 // loop_body
      %s22 = ssub.s32 %s17, 1
      %s23 = ssub.s32 %s17, 2
      %s30 = sadd.s32 1, %s25
      %p31 = scmp.ge.s32.totalorder %s30, 2
      %s32 = scalar_select %p31, 0, %s30
      %s33 = sadd.s32 1, %s24
      %s34 = scalar_select %p31, %s33, %s24
      %p35 = scmp.ge.s32.totalorder %s34, 2
      %s36 = scalar_select %p35, 0, %s34
      %s37 = ssub.s32 %s24, %s36
      %s38 = ssub.s32 %s25, %s32
      %s39 = sor.u32 %s37, %s38
      %p40 = scmp.eq.s32.totalorder %s39, 0
      %s42 = sadd.s32 %s41, 1
      %s43 = scalar_select %p40, %s41, %s42
      %p46 = pneg %p40
      %p47 = scmp.eq.s32.totalorder %s17, 3
      %p48 = por %p46, %p47
      %p49 = scmp.ne.s32.totalorder %s41, %s44
      %p50 = scmp.eq.s32.totalorder %s17, 0
      %p51 = por %p49, %p50
      %p52 = scmp.ne.s32.totalorder %s41, %s44
      %p53 = scmp.eq.s32.totalorder %s22, 3
      %p54 = por %p52, %p53
      %p55 = scmp.ne.s32.totalorder %s44, %s45
      %p56 = scmp.eq.s32.totalorder %s22, 0
      %p57 = por %p55, %p56
      %p58 = scmp.ne.s32.totalorder %s44, %s45
      %p59 = scmp.eq.s32.totalorder %s23, 3
      %p60 = por %p58, %p59
      %p62 = scmp.ne.s32.totalorder %s45, %s61
      %p63 = scmp.eq.s32.totalorder %s23, 0
      %p64 = por %p62, %p63
      %s65 = smul.u32 %s25, 8
      %s66 = ssub.s32 %s65, 1
      %p67 = scmp.gt.s32.totalorder %s66, 0
      %s68 = scalar_select %p67, %s66, 0
      %s69 = smul.u32 %s32, 8
      %s70 = ssub.s32 %s69, 1
      %p71 = scmp.gt.s32.totalorder %s70, 0
      %s72 = scalar_select %p71, %s70, 0
      %s73 = ssub.s32 %s24, %s36
      %s74 = ssub.s32 %s68, %s72
      %s75 = sor.u32 %s73, %s74
      %p76 = scmp.eq.s32.totalorder %s75, 0
      %s78 = sadd.s32 %s77, 1
      %s79 = scalar_select %p76, %s77, %s78
      %p82 = pneg %p76
      %p83 = scmp.eq.s32.totalorder %s17, 3
      %p84 = por %p82, %p83
      %p85 = scmp.ne.s32.totalorder %s77, %s80
      %p86 = scmp.eq.s32.totalorder %s17, 0
      %p87 = por %p85, %p86
      %p88 = scmp.ne.s32.totalorder %s77, %s80
      %p89 = scmp.eq.s32.totalorder %s22, 3
      %p90 = por %p88, %p89
      %p91 = scmp.ne.s32.totalorder %s80, %s81
      %p92 = scmp.eq.s32.totalorder %s22, 0
      %p93 = por %p91, %p92
      %p94 = scmp.ne.s32.totalorder %s80, %s81
      %p95 = scmp.eq.s32.totalorder %s23, 3
      %p96 = por %p94, %p95
      %p98 = scmp.ne.s32.totalorder %s81, %s97
      %p99 = scmp.eq.s32.totalorder %s23, 0
      %p100 = por %p98, %p99
      %s101 = sadd.s32 %s25, 1
      %s102 = smul.u32 %s101, 8
      %p103 = scmp.lt.s32.totalorder %s102, 15
      %s104 = scalar_select %p103, %s102, 15
      %s105 = sadd.s32 %s32, 1
      %s106 = smul.u32 %s105, 8
      %p107 = scmp.lt.s32.totalorder %s106, 15
      %s108 = scalar_select %p107, %s106, 15
      %s109 = ssub.s32 %s24, %s36
      %s110 = ssub.s32 %s104, %s108
      %s111 = sor.u32 %s109, %s110
      %p112 = scmp.eq.s32.totalorder %s111, 0
      %s114 = sadd.s32 %s113, 1
      %s115 = scalar_select %p112, %s113, %s114
      %p118 = pneg %p112
      %p119 = scmp.eq.s32.totalorder %s17, 3
      %p120 = por %p118, %p119
      %p121 = scmp.ne.s32.totalorder %s113, %s116
      %p122 = scmp.eq.s32.totalorder %s17, 0
      %p123 = por %p121, %p122
      %p124 = scmp.ne.s32.totalorder %s113, %s116
      %p125 = scmp.eq.s32.totalorder %s22, 3
      %p126 = por %p124, %p125
      %p127 = scmp.ne.s32.totalorder %s116, %s117
      %p128 = scmp.eq.s32.totalorder %s22, 0
      %p129 = por %p127, %p128
      %p130 = scmp.ne.s32.totalorder %s116, %s117
      %p131 = scmp.eq.s32.totalorder %s23, 3
      %p132 = por %p130, %p131
      %p134 = scmp.ne.s32.totalorder %s117, %s133
      %p135 = scmp.eq.s32.totalorder %s23, 0
      %p136 = por %p134, %p135
      %s138 = sadd.s32 %s137, 1
      %p141 = scmp.eq.s32.totalorder %s17, 3
      %p142 = scmp.ne.s32.totalorder %s137, %s139
      %p143 = scmp.eq.s32.totalorder %s17, 0
      %p144 = por %p142, %p143
      %p145 = scmp.ne.s32.totalorder %s137, %s139
      %p146 = scmp.eq.s32.totalorder %s22, 3
      %p147 = por %p145, %p146
      %p148 = scmp.ne.s32.totalorder %s139, %s140
      %p149 = scmp.eq.s32.totalorder %s22, 0
      %p150 = por %p148, %p149
      %p151 = scmp.ne.s32.totalorder %s139, %s140
      %p152 = scmp.eq.s32.totalorder %s23, 3
      %p153 = por %p151, %p152
      %p155 = scmp.ne.s32.totalorder %s140, %s154
      %p156 = scmp.eq.s32.totalorder %s23, 0
      %p157 = por %p155, %p156
      %s159 = sadd.s32 %s158, 1
      %p162 = scmp.eq.s32.totalorder %s17, 3
      %p163 = scmp.ne.s32.totalorder %s158, %s160
      %p164 = scmp.eq.s32.totalorder %s17, 0
      %p165 = por %p163, %p164
      %p166 = scmp.ne.s32.totalorder %s158, %s160
      %p167 = scmp.eq.s32.totalorder %s22, 3
      %p168 = por %p166, %p167
      %p169 = scmp.ne.s32.totalorder %s160, %s161
      %p170 = scmp.eq.s32.totalorder %s22, 0
      %p171 = por %p169, %p170
      %p172 = scmp.ne.s32.totalorder %s160, %s161
      %p173 = scmp.eq.s32.totalorder %s23, 3
      %p174 = por %p172, %p173
      %p176 = scmp.ne.s32.totalorder %s161, %s175
      %p177 = scmp.eq.s32.totalorder %s23, 0
      %p178 = por %p176, %p177
      %s180 = sadd.s32 %s179, 1
      %p183 = scmp.eq.s32.totalorder %s17, 3
      %p184 = scmp.ne.s32.totalorder %s179, %s181
      %p185 = scmp.eq.s32.totalorder %s17, 0
      %p186 = por %p184, %p185
      %p187 = scmp.ne.s32.totalorder %s179, %s181
      %p188 = scmp.eq.s32.totalorder %s22, 3
      %p189 = por %p187, %p188
      %p190 = scmp.ne.s32.totalorder %s181, %s182
      %p191 = scmp.eq.s32.totalorder %s22, 0
      %p192 = por %p190, %p191
      %p193 = scmp.ne.s32.totalorder %s181, %s182
      %p194 = scmp.eq.s32.totalorder %s23, 3
      %p195 = por %p193, %p194
      %p197 = scmp.ne.s32.totalorder %s182, %s196
      %p198 = scmp.eq.s32.totalorder %s23, 0
      %p199 = por %p197, %p198
      %s200 = ssub.s32 %s24, %s36
      %s201 = ssub.s32 %s25, %s32
      %s202 = sor.u32 %s200, %s201
      %p203 = scmp.eq.s32.totalorder %s202, 0
      %s205 = sadd.s32 %s204, 1
      %s206 = scalar_select %p203, %s204, %s205
      %p209 = pneg %p203
      %p210 = scmp.eq.s32.totalorder %s17, 3
      %p211 = por %p209, %p210
      %p212 = scmp.ne.s32.totalorder %s204, %s207
      %p213 = scmp.eq.s32.totalorder %s17, 0
      %p214 = por %p212, %p213
      %p215 = scmp.ne.s32.totalorder %s204, %s207
      %p216 = scmp.eq.s32.totalorder %s22, 3
      %p217 = por %p215, %p216
      %p218 = scmp.ne.s32.totalorder %s207, %s208
      %p219 = scmp.eq.s32.totalorder %s22, 0
      %p220 = por %p218, %p219
      %p221 = scmp.ne.s32.totalorder %s207, %s208
      %p222 = scmp.eq.s32.totalorder %s23, 3
      %p223 = por %p221, %p222
      %p225 = scmp.ne.s32.totalorder %s208, %s224
      %p226 = scmp.eq.s32.totalorder %s23, 0
      %p227 = por %p225, %p226
      %s228 = ssub.s32 %s24, %s36
      %s229 = ssub.s32 %s25, %s32
      %s230 = sor.u32 %s228, %s229
      %p231 = scmp.eq.s32.totalorder %s230, 0
      %s233 = sadd.s32 %s232, 1
      %s234 = scalar_select %p231, %s232, %s233
      %p237 = pneg %p231
      %p238 = scmp.eq.s32.totalorder %s17, 3
      %p239 = por %p237, %p238
      %p240 = scmp.ne.s32.totalorder %s232, %s235
      %p241 = scmp.eq.s32.totalorder %s17, 0
      %p242 = por %p240, %p241
      %p243 = scmp.ne.s32.totalorder %s232, %s235
      %p244 = scmp.eq.s32.totalorder %s22, 3
      %p245 = por %p243, %p244
      %p246 = scmp.ne.s32.totalorder %s235, %s236
      %p247 = scmp.eq.s32.totalorder %s22, 0
      %p248 = por %p246, %p247
      %p249 = scmp.ne.s32.totalorder %s235, %s236
      %p250 = scmp.eq.s32.totalorder %s23, 3
      %p251 = por %p249, %p250
      %p253 = scmp.ne.s32.totalorder %s236, %s252
      %p254 = scmp.eq.s32.totalorder %s23, 0
      %p255 = por %p253, %p254
      %p256 = scmp.le.s32.totalorder 1, %s17
      %p257 = scmp.lt.s32.totalorder %s17, 5
      %p258 = pnand %p256, %p257
      %p259 = pneg %p258
      // Predicated region
      $region9: #{tpu_custom_call.1} parent=5 // pred_check
        _
      $region10: #{tpu_custom_call.1} parent=5 // pred_check_branch
        %261 = sbr.rel (%p258) target = $region12
      $region11: #{tpu_custom_call.1} parent=5 // pred_region
        %s262 = ssub.s32 %s17, 1
        // Predicated region
        $region13: #{tpu_custom_call.1} parent=11 // pred_check
          %p263 = pneg %p150
        $region14: #{tpu_custom_call.1} parent=11 // pred_check_branch
          %265 = sbr.rel (%p263) target = $region16
        $region15: #{tpu_custom_call.1} parent=11 // pred_region
          _
        $region16: #{tpu_custom_call.1} parent=11 // pred_fallthru
          _
        // Predicated region
        $region17: #{tpu_custom_call.1} parent=11 // pred_check
          %p266 = pneg %p171
        $region18: #{tpu_custom_call.1} parent=11 // pred_check_branch
          %268 = sbr.rel (%p266) target = $region20
        $region19: #{tpu_custom_call.1} parent=11 // pred_region
          _
        $region20: #{tpu_custom_call.1} parent=11 // pred_fallthru
          _
        // Predicated region
        $region21: #{tpu_custom_call.1} parent=11 // pred_check
          %p269 = pneg %p192
        $region22: #{tpu_custom_call.1} parent=11 // pred_check_branch
          %271 = sbr.rel (%p269) target = $region24
        $region23: #{tpu_custom_call.1} parent=11 // pred_region
          _
        $region24: #{tpu_custom_call.1} parent=11 // pred_fallthru
          _
      $region12: #{tpu_custom_call.1} parent=5 // pred_fallthru
        _
      %p272 = scmp.lt.s32.totalorder %s17, 4
      // Predicated region
      $region25: #{tpu_custom_call.1} parent=5 // pred_check
        %p273 = pneg %p272
      $region26: #{tpu_custom_call.1} parent=5 // pred_check_branch
        %275 = sbr.rel (%p273) target = $region28
      $region27: #{tpu_custom_call.1} parent=5 // pred_region
        // Predicated region
        $region29: #{tpu_custom_call.1} parent=27 // pred_check
          %p276 = pneg %p51
        $region30: #{tpu_custom_call.1} parent=27 // pred_check_branch
          %278 = sbr.rel (%p276) target = $region32
        $region31: #{tpu_custom_call.1} parent=27 // pred_region
          %s279 = smul.u32 8, %s25
          %p280 = scmp.lt.s32.totalorder %s24, 1
          %s281 = scalar_select %p280, %s24, 1
          %p282 = scmp.lt.s32.totalorder %s279, 15
          %s283 = scalar_select %p282, %s279, 15
          %s284 = smul.addr %s283, 2
          %s285 = smul.addr %s281, 32
          %s286 = sadd.s32 %s284, %s285
          %s287 = smul.addr %s286, 8
          %s288 = scalar_lea.vmem %s0, %s287
          %s289 = smul.u32 8, %s25
        $region32: #{tpu_custom_call.1} parent=27 // pred_fallthru
          _
        // Predicated region
        $region33: #{tpu_custom_call.1} parent=27 // pred_check
          %p290 = pneg %p87
        $region34: #{tpu_custom_call.1} parent=27 // pred_check_branch
          %292 = sbr.rel (%p290) target = $region36
        $region35: #{tpu_custom_call.1} parent=27 // pred_region
          %s293 = smul.u32 %s25, 8
          %s294 = ssub.s32 %s293, 1
          %p295 = scmp.gt.s32.totalorder %s294, 0
          %s296 = scalar_select %p295, %s294, 0
          %p297 = scmp.lt.s32.totalorder %s24, 1
          %s298 = scalar_select %p297, %s24, 1
          %p299 = scmp.lt.s32.totalorder %s296, 15
          %s300 = scalar_select %p299, %s296, 15
          %s301 = smul.addr %s300, 2
          %s302 = smul.addr %s298, 32
          %s303 = sadd.s32 %s301, %s302
          %s304 = smul.addr %s303, 8
          %s305 = scalar_lea.vmem %s1, %s304
          %s306 = smul.u32 %s25, 8
          %s307 = ssub.s32 %s306, 1
          %p308 = scmp.gt.s32.totalorder %s307, 0
          %s309 = scalar_select %p308, %s307, 0
        $region36: #{tpu_custom_call.1} parent=27 // pred_fallthru
          _
        // Predicated region
        $region37: #{tpu_custom_call.1} parent=27 // pred_check
          %p310 = pneg %p123
        $region38: #{tpu_custom_call.1} parent=27 // pred_check_branch
          %312 = sbr.rel (%p310) target = $region40
        $region39: #{tpu_custom_call.1} parent=27 // pred_region
          %s313 = sadd.s32 %s25, 1
          %s314 = smul.u32 %s313, 8
          %p315 = scmp.lt.s32.totalorder %s314, 15
          %s316 = scalar_select %p315, %s314, 15
          %p317 = scmp.lt.s32.totalorder %s24, 1
          %s318 = scalar_select %p317, %s24, 1
          %p319 = scmp.lt.s32.totalorder %s316, 15
          %s320 = scalar_select %p319, %s316, 15
          %s321 = smul.addr %s320, 2
          %s322 = smul.addr %s318, 32
          %s323 = sadd.s32 %s321, %s322
          %s324 = smul.addr %s323, 8
          %s325 = scalar_lea.vmem %s2, %s324
          %s326 = sadd.s32 %s25, 1
          %s327 = smul.u32 %s326, 8
          %p328 = scmp.lt.s32.totalorder %s327, 15
          %s329 = scalar_select %p328, %s327, 15
        $region40: #{tpu_custom_call.1} parent=27 // pred_fallthru
          _
      $region28: #{tpu_custom_call.1} parent=5 // pred_fallthru
        _
      %p330 = scmp.le.s32.totalorder 1, %s17
      %p331 = scmp.lt.s32.totalorder %s17, 5
      %p332 = pnand %p330, %p331
      %p333 = pneg %p332
      // Predicated region
      $region41: #{tpu_custom_call.1} parent=5 // pred_check
        _
      $region42: #{tpu_custom_call.1} parent=5 // pred_check_branch
        %335 = sbr.rel (%p332) target = $region44
      $region43: #{tpu_custom_call.1} parent=5 // pred_region
        %s336 = ssub.s32 %s17, 1
        %s337 = smul.u32 8, %s27
        %p338 = scmp.lt.s32.totalorder %s26, 1
        %s339 = scalar_select %p338, %s26, 1
        %p340 = scmp.lt.s32.totalorder %s337, 15
        %s341 = scalar_select %p340, %s337, 15
        %s342 = smul.addr %s341, 2
        %s343 = smul.addr %s339, 32
        %s344 = sadd.s32 %s342, %s343
        %s345 = smul.addr %s344, 8
        %s346 = scalar_lea.vmem %s0, %s345
        %p347 = pneg %p57
        %p348 = pneg %p54
        %s349 = smul.u32 %s27, 8
        %s350 = ssub.s32 %s349, 1
        %p351 = scmp.gt.s32.totalorder %s350, 0
        %s352 = scalar_select %p351, %s350, 0
        %p353 = scmp.lt.s32.totalorder %s26, 1
        %s354 = scalar_select %p353, %s26, 1
        %p355 = scmp.lt.s32.totalorder %s352, 15
        %s356 = scalar_select %p355, %s352, 15
        %s357 = smul.addr %s356, 2
        %s358 = smul.addr %s354, 32
        %s359 = sadd.s32 %s357, %s358
        %s360 = smul.addr %s359, 8
        %s361 = scalar_lea.vmem %s1, %s360
        %p362 = pneg %p93
        %p363 = pneg %p90
        %s364 = sadd.s32 %s27, 1
        %s365 = smul.u32 %s364, 8
        %p366 = scmp.lt.s32.totalorder %s365, 15
        %s367 = scalar_select %p366, %s365, 15
        %p368 = scmp.lt.s32.totalorder %s26, 1
        %s369 = scalar_select %p368, %s26, 1
        %p370 = scmp.lt.s32.totalorder %s367, 15
        %s371 = scalar_select %p370, %s367, 15
        %s372 = smul.addr %s371, 2
        %s373 = smul.addr %s369, 32
        %s374 = sadd.s32 %s372, %s373
        %s375 = smul.addr %s374, 8
        %s376 = scalar_lea.vmem %s2, %s375
        %p377 = pneg %p129
        %p378 = pneg %p126
        %p379 = pneg %p150
        %p380 = pneg %p147
        %p381 = pneg %p171
        %p382 = pneg %p168
        %p383 = pneg %p192
        %p384 = pneg %p189
        %p385 = pneg %p220
        %p386 = pneg %p217
        %s387 = smul.u32 8, %s27
        %p388 = scmp.lt.s32.totalorder %s26, 1
        %s389 = scalar_select %p388, %s26, 1
        %p390 = scmp.lt.s32.totalorder %s387, 15
        %s391 = scalar_select %p390, %s387, 15
        %s392 = smul.addr %s391, 2
        %s393 = smul.addr %s389, 32
        %s394 = sadd.s32 %s392, %s393
        %s395 = smul.addr %s394, 8
        %s396 = scalar_lea.vmem %s6, %s395
        %p397 = pneg %p248
        %p398 = pneg %p245
        %s399 = sand.u32 %s235, 1
        %s400 = scalar_lea.sflag [#allocation3], %s399
        %s401 = sand.u32 %s235, 1
        %s402 = scalar_lea.vmem [#allocation2], %s401
        %s403 = smul.u32 8, %s27
        %p404 = scmp.lt.s32.totalorder %s26, 1
        %s405 = scalar_select %p404, %s26, 1
        %p406 = scmp.lt.s32.totalorder %s403, 15
        %s407 = scalar_select %p406, %s403, 15
        %s408 = smul.addr %s407, 2
        %s409 = smul.addr %s405, 32
        %s410 = sadd.s32 %s408, %s409
        %s411 = smul.addr %s410, 8
        %s412 = scalar_lea.vmem %s0, %s411
        %s413 = smul.u32 8, %s27
        %s414 = smul.u32 %s27, 8
        %s415 = ssub.s32 %s414, 1
        %p416 = scmp.gt.s32.totalorder %s415, 0
        %s417 = scalar_select %p416, %s415, 0
        %p418 = scmp.lt.s32.totalorder %s26, 1
        %s419 = scalar_select %p418, %s26, 1
        %p420 = scmp.lt.s32.totalorder %s417, 15
        %s421 = scalar_select %p420, %s417, 15
        %s422 = smul.addr %s421, 2
        %s423 = smul.addr %s419, 32
        %s424 = sadd.s32 %s422, %s423
        %s425 = smul.addr %s424, 8
        %s426 = scalar_lea.vmem %s1, %s425
        %s427 = smul.u32 %s27, 8
        %s428 = ssub.s32 %s427, 1
        %p429 = scmp.gt.s32.totalorder %s428, 0
        %s430 = scalar_select %p429, %s428, 0
        %s431 = sadd.s32 %s27, 1
        %s432 = smul.u32 %s431, 8
        %p433 = scmp.lt.s32.totalorder %s432, 15
        %s434 = scalar_select %p433, %s432, 15
        %p435 = scmp.lt.s32.totalorder %s26, 1
        %s436 = scalar_select %p435, %s26, 1
        %p437 = scmp.lt.s32.totalorder %s434, 15
        %s438 = scalar_select %p437, %s434, 15
        %s439 = smul.addr %s438, 2
        %s440 = smul.addr %s436, 32
        %s441 = sadd.s32 %s439, %s440
        %s442 = smul.addr %s441, 8
        %s443 = scalar_lea.vmem %s2, %s442
        %s444 = sadd.s32 %s27, 1
        %s445 = smul.u32 %s444, 8
        %p446 = scmp.lt.s32.totalorder %s445, 15
        %s447 = scalar_select %p446, %s445, 15
        %s448 = smul.u32 8, %s27
        %p449 = scmp.lt.s32.totalorder %s26, 1
        %s450 = scalar_select %p449, %s26, 1
        %p451 = scmp.lt.s32.totalorder %s448, 15
        %s452 = scalar_select %p451, %s448, 15
        %s453 = smul.addr %s452, 2
        %s454 = smul.addr %s450, 32
        %s455 = sadd.s32 %s453, %s454
        %s456 = smul.addr %s455, 8
        %s457 = scalar_lea.vmem %s6, %s456
        %s458 = smul.u32 8, %s27
        %v459 = vld [vmem:[%s426] sm:$0xff]
        %v460 = vld [vmem:[%s426 + $0x8] sm:$0xff]
        %p461 = scmp.gt.s32.totalorder %s27, 0
        %s462 = scalar_select %p461, 1, 0
        %s463 = scvt.s32.f32 %s462
        %v464 = vstv %s463
        %v465 = vmul.f32 %v459, %v464
        %v466 = vmul.f32 %v460, %v464
        %v467 = vld [vmem:[%s443] sm:$0xff]
        %v468 = vld [vmem:[%s443 + $0x8] sm:$0xff]
        %p469 = scmp.lt.s32.totalorder %s27, 1
        %s470 = scalar_select %p469, 1, 0
        %s471 = scvt.s32.f32 %s470
        %v472 = vstv %s471
        %v473 = vmul.f32 %v467, %v472
        %v474 = vmul.f32 %v468, %v472
        %v475 = vld [vmem:[%s412] sm:$0xff]
        %v476 = vld [vmem:[%s412 + $0x8] sm:$0xff]
        %v477 = vld [vmem:[%s412 + $0x10] sm:$0xff]
        %v478 = vld [vmem:[%s412 + $0x18] sm:$0xff]
        %v479 = vld [vmem:[%s412 + $0x20] sm:$0xff]
        %v480 = vld [vmem:[%s412 + $0x28] sm:$0xff]
        %v481 = vld [vmem:[%s412 + $0x30] sm:$0xff]
        %v482 = vld [vmem:[%s412 + $0x38] sm:$0xff]
        %v483 = vld [vmem:[%s412 + $0x40] sm:$0xff]
        %v484 = vld [vmem:[%s412 + $0x48] sm:$0xff]
        %v485 = vld [vmem:[%s412 + $0x50] sm:$0xff]
        %v486 = vld [vmem:[%s412 + $0x58] sm:$0xff]
        %v487 = vld [vmem:[%s412 + $0x60] sm:$0xff]
        %v488 = vld [vmem:[%s412 + $0x68] sm:$0xff]
        %v489 = vld [vmem:[%s412 + $0x70] sm:$0xff]
        %v490 = vld [vmem:[%s412 + $0x78] sm:$0xff]
        %vm511 = vcmask 1040384
        %v512 = vrot.slane %v465, 7
        %v513 = vrot.slane %v466, 7
        %v514 = vsel %vm511, %v512, %v513
        %v515 = vrot.slane %v475, 7
        %v516 = vrot.slane %v476, 7
        %v517 = vsel %vm511, %v515, %v516
        %v518 = vrot.slane %v477, 7
        %v519 = vrot.slane %v478, 7
        %v520 = vsel %vm511, %v518, %v519
        %v521 = vrot.slane %v479, 7
        %v522 = vrot.slane %v480, 7
        %v523 = vsel %vm511, %v521, %v522
        %v524 = vrot.slane %v481, 7
        %v525 = vrot.slane %v482, 7
        %v526 = vsel %vm511, %v524, %v525
        %v527 = vrot.slane %v483, 7
        %v528 = vrot.slane %v484, 7
        %v529 = vsel %vm511, %v527, %v528
        %v530 = vrot.slane %v485, 7
        %v531 = vrot.slane %v486, 7
        %v532 = vsel %vm511, %v530, %v531
        %v533 = vrot.slane %v487, 7
        %v534 = vrot.slane %v488, 7
        %v535 = vsel %vm511, %v533, %v534
        %v536 = vrot.slane %v489, 7
        %v537 = vrot.slane %v490, 7
        %v538 = vsel %vm511, %v536, %v537
        %v539 = vrot.slane %v473, 7
        %v540 = vrot.slane %v474, 7
        %v541 = vsel %vm511, %v539, %v540
        %v572 = vsel %vm511, 0.0, %v512
        %v573 = vsel %vm511, 0.0, %v515
        %v574 = vsel %vm511, 0.0, %v518
        %v575 = vsel %vm511, 0.0, %v521
        %v576 = vsel %vm511, 0.0, %v524
        %v577 = vsel %vm511, 0.0, %v527
        %v578 = vsel %vm511, 0.0, %v530
        %v579 = vsel %vm511, 0.0, %v533
        %v580 = vsel %vm511, 0.0, %v536
        %v581 = vsel %vm511, 0.0, %v539
        %v582 = vsel %vm511, %v513, 0.0
        %v583 = vsel %vm511, %v516, 0.0
        %v584 = vsel %vm511, %v519, 0.0
        %v585 = vsel %vm511, %v522, 0.0
        %v586 = vsel %vm511, %v525, 0.0
        %v587 = vsel %vm511, %v528, 0.0
        %v588 = vsel %vm511, %v531, 0.0
        %v589 = vsel %vm511, %v534, 0.0
        %v590 = vsel %vm511, %v537, 0.0
        %v591 = vsel %vm511, %v540, 0.0
        %vm608 = vcmask 1046528
        %v609 = vrot.slane %v572, 1
        %v610 = vrot.slane %v514, 1
        %v611 = vsel %vm608, %v609, %v610
        %v612 = vrot.slane %v582, 1
        %v613 = vsel %vm608, %v610, %v612
        %v614 = vrot.slane %v573, 1
        %v615 = vrot.slane %v517, 1
        %v616 = vsel %vm608, %v614, %v615
        %v617 = vrot.slane %v583, 1
        %v618 = vsel %vm608, %v615, %v617
        %v619 = vrot.slane %v574, 1
        %v620 = vrot.slane %v520, 1
        %v621 = vsel %vm608, %v619, %v620
        %v622 = vrot.slane %v584, 1
        %v623 = vsel %vm608, %v620, %v622
        %v624 = vrot.slane %v575, 1
        %v625 = vrot.slane %v523, 1
        %v626 = vsel %vm608, %v624, %v625
        %v627 = vrot.slane %v585, 1
        %v628 = vsel %vm608, %v625, %v627
        %v629 = vrot.slane %v576, 1
        %v630 = vrot.slane %v526, 1
        %v631 = vsel %vm608, %v629, %v630
        %v632 = vrot.slane %v586, 1
        %v633 = vsel %vm608, %v630, %v632
        %v634 = vrot.slane %v577, 1
        %v635 = vrot.slane %v529, 1
        %v636 = vsel %vm608, %v634, %v635
        %v637 = vrot.slane %v587, 1
        %v638 = vsel %vm608, %v635, %v637
        %v639 = vrot.slane %v578, 1
        %v640 = vrot.slane %v532, 1
        %v641 = vsel %vm608, %v639, %v640
        %v642 = vrot.slane %v588, 1
        %v643 = vsel %vm608, %v640, %v642
        %v644 = vrot.slane %v579, 1
        %v645 = vrot.slane %v535, 1
        %v646 = vsel %vm608, %v644, %v645
        %v647 = vrot.slane %v589, 1
        %v648 = vsel %vm608, %v645, %v647
        %649 = vrot.lane.b32.xlu0 %v611, 4
        %v650 = vpop.permute.xlu0 %649
        %651 = vrot.lane.b32.xlu0 %v613, 4
        %v652 = vpop.permute.xlu0 %651
        %653 = vrot.lane.b32.xlu0 %v616, 4
        %v654 = vpop.permute.xlu0 %653
        %655 = vrot.lane.b32.xlu0 %v618, 4
        %v656 = vpop.permute.xlu0 %655
        %657 = vrot.lane.b32.xlu0 %v621, 4
        %v658 = vpop.permute.xlu0 %657
        %659 = vrot.lane.b32.xlu0 %v623, 4
        %v660 = vpop.permute.xlu0 %659
        %661 = vrot.lane.b32.xlu0 %v626, 4
        %v662 = vpop.permute.xlu0 %661
        %663 = vrot.lane.b32.xlu0 %v628, 4
        %v664 = vpop.permute.xlu0 %663
        %665 = vrot.lane.b32.xlu0 %v631, 4
        %v666 = vpop.permute.xlu0 %665
        %667 = vrot.lane.b32.xlu0 %v633, 4
        %v668 = vpop.permute.xlu0 %667
        %669 = vrot.lane.b32.xlu0 %v636, 4
        %v670 = vpop.permute.xlu0 %669
        %671 = vrot.lane.b32.xlu0 %v638, 4
        %v672 = vpop.permute.xlu0 %671
        %673 = vrot.lane.b32.xlu0 %v641, 4
        %v674 = vpop.permute.xlu0 %673
        %675 = vrot.lane.b32.xlu0 %v643, 4
        %v676 = vpop.permute.xlu0 %675
        %677 = vrot.lane.b32.xlu0 %v646, 4
        %v678 = vpop.permute.xlu0 %677
        %679 = vrot.lane.b32.xlu0 %v648, 4
        %v680 = vpop.permute.xlu0 %679
        %vm697 = vcmask 1045504
        %v698 = vrot.slane %v572, 2
        %v699 = vrot.slane %v514, 2
        %v700 = vsel %vm697, %v698, %v699
        %v701 = vrot.slane %v582, 2
        %v702 = vsel %vm697, %v699, %v701
        %v703 = vrot.slane %v573, 2
        %v704 = vrot.slane %v517, 2
        %v705 = vsel %vm697, %v703, %v704
        %v706 = vrot.slane %v583, 2
        %v707 = vsel %vm697, %v704, %v706
        %v708 = vrot.slane %v574, 2
        %v709 = vrot.slane %v520, 2
        %v710 = vsel %vm697, %v708, %v709
        %v711 = vrot.slane %v584, 2
        %v712 = vsel %vm697, %v709, %v711
        %v713 = vrot.slane %v575, 2
        %v714 = vrot.slane %v523, 2
        %v715 = vsel %vm697, %v713, %v714
        %v716 = vrot.slane %v585, 2
        %v717 = vsel %vm697, %v714, %v716
        %v718 = vrot.slane %v576, 2
        %v719 = vrot.slane %v526, 2
        %v720 = vsel %vm697, %v718, %v719
        %v721 = vrot.slane %v586, 2
        %v722 = vsel %vm697, %v719, %v721
        %v723 = vrot.slane %v577, 2
        %v724 = vrot.slane %v529, 2
        %v725 = vsel %vm697, %v723, %v724
        %v726 = vrot.slane %v587, 2
        %v727 = vsel %vm697, %v724, %v726
        %v728 = vrot.slane %v578, 2
        %v729 = vrot.slane %v532, 2
        %v730 = vsel %vm697, %v728, %v729
        %v731 = vrot.slane %v588, 2
        %v732 = vsel %vm697, %v729, %v731
        %v733 = vrot.slane %v579, 2
        %v734 = vrot.slane %v535, 2
        %v735 = vsel %vm697, %v733, %v734
        %v736 = vrot.slane %v589, 2
        %v737 = vsel %vm697, %v734, %v736
        %738 = vrot.lane.b32.xlu0 %v700, 8
        %v739 = vpop.permute.xlu0 %738
        %740 = vrot.lane.b32.xlu0 %v702, 8
        %v741 = vpop.permute.xlu0 %740
        %742 = vrot.lane.b32.xlu0 %v705, 8
        %v743 = vpop.permute.xlu0 %742
        %744 = vrot.lane.b32.xlu0 %v707, 8
        %v745 = vpop.permute.xlu0 %744
        %746 = vrot.lane.b32.xlu0 %v710, 8
        %v747 = vpop.permute.xlu0 %746
        %748 = vrot.lane.b32.xlu0 %v712, 8
        %v749 = vpop.permute.xlu0 %748
        %750 = vrot.lane.b32.xlu0 %v715, 8
        %v751 = vpop.permute.xlu0 %750
        %752 = vrot.lane.b32.xlu0 %v717, 8
        %v753 = vpop.permute.xlu0 %752
        %754 = vrot.lane.b32.xlu0 %v720, 8
        %v755 = vpop.permute.xlu0 %754
        %756 = vrot.lane.b32.xlu0 %v722, 8
        %v757 = vpop.permute.xlu0 %756
        %758 = vrot.lane.b32.xlu0 %v725, 8
        %v759 = vpop.permute.xlu0 %758
        %760 = vrot.lane.b32.xlu0 %v727, 8
        %v761 = vpop.permute.xlu0 %760
        %762 = vrot.lane.b32.xlu0 %v730, 8
        %v763 = vpop.permute.xlu0 %762
        %764 = vrot.lane.b32.xlu0 %v732, 8
        %v765 = vpop.permute.xlu0 %764
        %766 = vrot.lane.b32.xlu0 %v735, 8
        %v767 = vpop.permute.xlu0 %766
        %768 = vrot.lane.b32.xlu0 %v737, 8
        %v769 = vpop.permute.xlu0 %768
        %vm786 = vcmask 31744
        %v787 = vsel %vm786, %v572, %v650
        %v788 = vsel %vm786, %v514, %v652
        %v789 = vsel %vm786, %v573, %v654
        %v790 = vsel %vm786, %v517, %v656
        %v791 = vsel %vm786, %v574, %v658
        %v792 = vsel %vm786, %v520, %v660
        %v793 = vsel %vm786, %v575, %v662
        %v794 = vsel %vm786, %v523, %v664
        %v795 = vsel %vm786, %v576, %v666
        %v796 = vsel %vm786, %v526, %v668
        %v797 = vsel %vm786, %v577, %v670
        %v798 = vsel %vm786, %v529, %v672
        %v799 = vsel %vm786, %v578, %v674
        %v800 = vsel %vm786, %v532, %v676
        %v801 = vsel %vm786, %v579, %v678
        %v802 = vsel %vm786, %v535, %v680
        %vm803 = vcmask 64512
        %v804 = vsel %vm803, %v787, %v739
        %v805 = vsel %vm803, %v788, %v741
        %v806 = vsel %vm803, %v789, %v743
        %v807 = vsel %vm803, %v790, %v745
        %v808 = vsel %vm803, %v791, %v747
        %v809 = vsel %vm803, %v792, %v749
        %v810 = vsel %vm803, %v793, %v751
        %v811 = vsel %vm803, %v794, %v753
        %v812 = vsel %vm803, %v795, %v755
        %v813 = vsel %vm803, %v796, %v757
        %v814 = vsel %vm803, %v797, %v759
        %v815 = vsel %vm803, %v798, %v761
        %v816 = vsel %vm803, %v799, %v763
        %v817 = vsel %vm803, %v800, %v765
        %v818 = vsel %vm803, %v801, %v767
        %v819 = vsel %vm803, %v802, %v769
        %v820 = vld [vmem:[%s3] sm:$0xff]
        %v821 = vld [vmem:[%s3 + $0x8] sm:$0xf]
        %v824 = vrot.slane %v580, 1
        %v825 = vrot.slane %v538, 1
        %v826 = vsel %vm608, %v824, %v825
        %v827 = vrot.slane %v590, 1
        %v828 = vsel %vm608, %v825, %v827
        %829 = vrot.lane.b32.xlu0 %v826, 4
        %v830 = vpop.permute.xlu0 %829
        %831 = vrot.lane.b32.xlu0 %v828, 4
        %v832 = vpop.permute.xlu0 %831
        %v835 = vrot.slane %v580, 2
        %v836 = vrot.slane %v538, 2
        %v837 = vsel %vm697, %v835, %v836
        %v838 = vrot.slane %v590, 2
        %v839 = vsel %vm697, %v836, %v838
        %840 = vrot.lane.b32.xlu0 %v837, 8
        %v841 = vpop.permute.xlu0 %840
        %842 = vrot.lane.b32.xlu0 %v839, 8
        %v843 = vpop.permute.xlu0 %842
        %v846 = vsel %vm786, %v580, %v830
        %v847 = vsel %vm786, %v538, %v832
        %v848 = vsel %vm803, %v846, %v841
        %v849 = vsel %vm803, %v847, %v843
        %s850 = scalar_lea.vmem %s3, 16
        %v851 = vld [vmem:[%s850] sm:$0xff]
        %v852 = vld [vmem:[%s850 + $0x8] sm:$0xf]
        %vm853 = vcmask 97280
        %v855 = vsel %vm853, %v806, 0
        %v858 = vsel %vm853, %v807, 0
        %v861 = vsel %vm853, %v808, 0
        %v864 = vsel %vm853, %v809, 0
        %v867 = vsel %vm853, %v810, 0
        %v870 = vsel %vm853, %v811, 0
        %v873 = vsel %vm853, %v812, 0
        %v876 = vsel %vm853, %v813, 0
        %v879 = vsel %vm853, %v814, 0
        %v882 = vsel %vm853, %v815, 0
        %v885 = vsel %vm853, %v816, 0
        %v888 = vsel %vm853, %v817, 0
        %v891 = vsel %vm853, %v818, 0
        %v894 = vsel %vm853, %v819, 0
        %v897 = vsel %vm853, %v848, 0
        %v900 = vsel %vm853, %v849, 0
        %vm902 = vcmask 1043456
        %v904 = vsel %vm902, %v852, 0
        %906 = vmatpush.msra.mxu0 0.0
        %907 = vmatpush.msra.mxu0 0.0
        %908 = vmatpush.msra.mxu0 0.0
        %909 = vmatpush.msra.mxu0 0.0
        %910 = vmatpush.msra.mxu0 0.0
        %911 = vmatpush.msra.mxu0 0.0
        %912 = vmatpush.msra.mxu0 0.0
        %913 = vmatpush.msra.mxu0 0.0
        %914 = vmatpush.msra.mxu0 0.0
        %915 = vmatpush.msra.mxu0 0.0
        %916 = vmatpush.msra.mxu0 0.0
        %917 = vmatpush.msra.mxu0 0.0
        %918 = vmatpush.msra.mxu0 0.0
        %919 = vmatpush.msra.mxu0 0.0
        %920 = vmatpush.msra.mxu0 %v904
        %921 = vmatpush.msra.mxu0 %v851
        %922 = vmatmul.f32.gmra.mxu0 %v855
        %v923 = vpop.f32.mrf.mxu0
        %v924 = vadd.f32 0.0, %v923
        %925 = vmatmul.f32.gmra.mxu0 %v858
        %v926 = vpop.f32.mrf.mxu0
        %v927 = vadd.f32 0.0, %v926
        %928 = vmatmul.f32.gmra.mxu0 %v861
        %v929 = vpop.f32.mrf.mxu0
        %v930 = vadd.f32 0.0, %v929
        %931 = vmatmul.f32.gmra.mxu0 %v864
        %v932 = vpop.f32.mrf.mxu0
        %v933 = vadd.f32 0.0, %v932
        %934 = vmatmul.f32.gmra.mxu0 %v867
        %v935 = vpop.f32.mrf.mxu0
        %v936 = vadd.f32 0.0, %v935
        %937 = vmatmul.f32.gmra.mxu0 %v870
        %v938 = vpop.f32.mrf.mxu0
        %v939 = vadd.f32 0.0, %v938
        %940 = vmatmul.f32.gmra.mxu0 %v873
        %v941 = vpop.f32.mrf.mxu0
        %v942 = vadd.f32 0.0, %v941
        %943 = vmatmul.f32.gmra.mxu0 %v876
        %v944 = vpop.f32.mrf.mxu0
        %v945 = vadd.f32 0.0, %v944
        %946 = vmatmul.f32.gmra.mxu0 %v879
        %v947 = vpop.f32.mrf.mxu0
        %v948 = vadd.f32 0.0, %v947
        %949 = vmatmul.f32.gmra.mxu0 %v882
        %v950 = vpop.f32.mrf.mxu0
        %v951 = vadd.f32 0.0, %v950
        %952 = vmatmul.f32.gmra.mxu0 %v885
        %v953 = vpop.f32.mrf.mxu0
        %v954 = vadd.f32 0.0, %v953
        %955 = vmatmul.f32.gmra.mxu0 %v888
        %v956 = vpop.f32.mrf.mxu0
        %v957 = vadd.f32 0.0, %v956
        %958 = vmatmul.f32.gmra.mxu0 %v891
        %v959 = vpop.f32.mrf.mxu0
        %v960 = vadd.f32 0.0, %v959
        %961 = vmatmul.f32.gmra.mxu0 %v894
        %v962 = vpop.f32.mrf.mxu0
        %v963 = vadd.f32 0.0, %v962
        %964 = vmatmul.f32.gmra.mxu0 %v897
        %v965 = vpop.f32.mrf.mxu0
        %v966 = vadd.f32 0.0, %v965
        %967 = vmatmul.f32.gmra.mxu0 %v900
        %v968 = vpop.f32.mrf.mxu0
        %v969 = vadd.f32 0.0, %v968
        %970 = vdwg.mxu0
        %v972 = vsel %vm853, %v804, 0
        %v975 = vsel %vm853, %v805, 0
        %v978 = vsel %vm902, %v821, 0
        %980 = vmatpush.msra.mxu0 0.0
        %981 = vmatpush.msra.mxu0 0.0
        %982 = vmatpush.msra.mxu0 0.0
        %983 = vmatpush.msra.mxu0 0.0
        %984 = vmatpush.msra.mxu0 0.0
        %985 = vmatpush.msra.mxu0 0.0
        %986 = vmatpush.msra.mxu0 0.0
        %987 = vmatpush.msra.mxu0 0.0
        %988 = vmatpush.msra.mxu0 0.0
        %989 = vmatpush.msra.mxu0 0.0
        %990 = vmatpush.msra.mxu0 0.0
        %991 = vmatpush.msra.mxu0 0.0
        %992 = vmatpush.msra.mxu0 0.0
        %993 = vmatpush.msra.mxu0 0.0
        %994 = vmatpush.msra.mxu0 %v978
        %995 = vmatpush.msra.mxu0 %v820
        %996 = vmatmul.f32.gmra.mxu0 %v972
        %v997 = vpop.f32.mrf.mxu0
        %v998 = vadd.f32 %v924, %v997
        %999 = vmatmul.f32.gmra.mxu0 %v975
        %v1000 = vpop.f32.mrf.mxu0
        %v1001 = vadd.f32 %v927, %v1000
        %1002 = vmatmul.f32.gmra.mxu0 %v855
        %v1003 = vpop.f32.mrf.mxu0
        %v1004 = vadd.f32 %v930, %v1003
        %1005 = vmatmul.f32.gmra.mxu0 %v858
        %v1006 = vpop.f32.mrf.mxu0
        %v1007 = vadd.f32 %v933, %v1006
        %1008 = vmatmul.f32.gmra.mxu0 %v861
        %v1009 = vpop.f32.mrf.mxu0
        %v1010 = vadd.f32 %v936, %v1009
        %1011 = vmatmul.f32.gmra.mxu0 %v864
        %v1012 = vpop.f32.mrf.mxu0
        %v1013 = vadd.f32 %v939, %v1012
        %1014 = vmatmul.f32.gmra.mxu0 %v867
        %v1015 = vpop.f32.mrf.mxu0
        %v1016 = vadd.f32 %v942, %v1015
        %1017 = vmatmul.f32.gmra.mxu0 %v870
        %v1018 = vpop.f32.mrf.mxu0
        %v1019 = vadd.f32 %v945, %v1018
        %1020 = vmatmul.f32.gmra.mxu0 %v873
        %v1021 = vpop.f32.mrf.mxu0
        %v1022 = vadd.f32 %v948, %v1021
        %1023 = vmatmul.f32.gmra.mxu0 %v876
        %v1024 = vpop.f32.mrf.mxu0
        %v1025 = vadd.f32 %v951, %v1024
        %1026 = vmatmul.f32.gmra.mxu0 %v879
        %v1027 = vpop.f32.mrf.mxu0
        %v1028 = vadd.f32 %v954, %v1027
        %1029 = vmatmul.f32.gmra.mxu0 %v882
        %v1030 = vpop.f32.mrf.mxu0
        %v1031 = vadd.f32 %v957, %v1030
        %1032 = vmatmul.f32.gmra.mxu0 %v885
        %v1033 = vpop.f32.mrf.mxu0
        %v1034 = vadd.f32 %v960, %v1033
        %1035 = vmatmul.f32.gmra.mxu0 %v888
        %v1036 = vpop.f32.mrf.mxu0
        %v1037 = vadd.f32 %v963, %v1036
        %1038 = vmatmul.f32.gmra.mxu0 %v891
        %v1039 = vpop.f32.mrf.mxu0
        %v1040 = vadd.f32 %v966, %v1039
        %1041 = vmatmul.f32.gmra.mxu0 %v894
        %v1042 = vpop.f32.mrf.mxu0
        %v1043 = vadd.f32 %v969, %v1042
        %1044 = vdwg.mxu0
        %v1047 = vrot.slane %v581, 1
        %v1048 = vrot.slane %v541, 1
        %v1049 = vsel %vm608, %v1047, %v1048
        %v1050 = vrot.slane %v591, 1
        %v1051 = vsel %vm608, %v1048, %v1050
        %1052 = vrot.lane.b32.xlu0 %v1049, 4
        %v1053 = vpop.permute.xlu0 %1052
        %1054 = vrot.lane.b32.xlu0 %v1051, 4
        %v1055 = vpop.permute.xlu0 %1054
        %v1058 = vrot.slane %v581, 2
        %v1059 = vrot.slane %v541, 2
        %v1060 = vsel %vm697, %v1058, %v1059
        %v1061 = vrot.slane %v591, 2
        %v1062 = vsel %vm697, %v1059, %v1061
        %1063 = vrot.lane.b32.xlu0 %v1060, 8
        %v1064 = vpop.permute.xlu0 %1063
        %1065 = vrot.lane.b32.xlu0 %v1062, 8
        %v1066 = vpop.permute.xlu0 %1065
        %v1069 = vsel %vm786, %v581, %v1053
        %v1070 = vsel %vm786, %v541, %v1055
        %v1071 = vsel %vm803, %v1069, %v1064
        %v1072 = vsel %vm803, %v1070, %v1066
        %s1073 = scalar_lea.vmem %s3, 32
        %v1074 = vld [vmem:[%s1073] sm:$0xff]
        %v1075 = vld [vmem:[%s1073 + $0x8] sm:$0xf]
        %v1077 = vsel %vm853, %v1071, 0
        %v1080 = vsel %vm853, %v1072, 0
        %v1083 = vsel %vm902, %v1075, 0
        %1085 = vmatpush.msra.mxu0 0.0
        %1086 = vmatpush.msra.mxu0 0.0
        %1087 = vmatpush.msra.mxu0 0.0
        %1088 = vmatpush.msra.mxu0 0.0
        %1089 = vmatpush.msra.mxu0 0.0
        %1090 = vmatpush.msra.mxu0 0.0
        %1091 = vmatpush.msra.mxu0 0.0
        %1092 = vmatpush.msra.mxu0 0.0
        %1093 = vmatpush.msra.mxu0 0.0
        %1094 = vmatpush.msra.mxu0 0.0
        %1095 = vmatpush.msra.mxu0 0.0
        %1096 = vmatpush.msra.mxu0 0.0
        %1097 = vmatpush.msra.mxu0 0.0
        %1098 = vmatpush.msra.mxu0 0.0
        %1099 = vmatpush.msra.mxu0 %v1083
        %1100 = vmatpush.msra.mxu0 %v1074
        %1101 = vmatmul.f32.gmra.mxu0 %v861
        %v1102 = vpop.f32.mrf.mxu0
        %v1103 = vadd.f32 0.0, %v1102
        %1104 = vmatmul.f32.gmra.mxu0 %v864
        %v1105 = vpop.f32.mrf.mxu0
        %v1106 = vadd.f32 0.0, %v1105
        %1107 = vmatmul.f32.gmra.mxu0 %v867
        %v1108 = vpop.f32.mrf.mxu0
        %v1109 = vadd.f32 0.0, %v1108
        %1110 = vmatmul.f32.gmra.mxu0 %v870
        %v1111 = vpop.f32.mrf.mxu0
        %v1112 = vadd.f32 0.0, %v1111
        %1113 = vmatmul.f32.gmra.mxu0 %v873
        %v1114 = vpop.f32.mrf.mxu0
        %v1115 = vadd.f32 0.0, %v1114
        %1116 = vmatmul.f32.gmra.mxu0 %v876
        %v1117 = vpop.f32.mrf.mxu0
        %v1118 = vadd.f32 0.0, %v1117
        %1119 = vmatmul.f32.gmra.mxu0 %v879
        %v1120 = vpop.f32.mrf.mxu0
        %v1121 = vadd.f32 0.0, %v1120
        %1122 = vmatmul.f32.gmra.mxu0 %v882
        %v1123 = vpop.f32.mrf.mxu0
        %v1124 = vadd.f32 0.0, %v1123
        %1125 = vmatmul.f32.gmra.mxu0 %v885
        %v1126 = vpop.f32.mrf.mxu0
        %v1127 = vadd.f32 0.0, %v1126
        %1128 = vmatmul.f32.gmra.mxu0 %v888
        %v1129 = vpop.f32.mrf.mxu0
        %v1130 = vadd.f32 0.0, %v1129
        %1131 = vmatmul.f32.gmra.mxu0 %v891
        %v1132 = vpop.f32.mrf.mxu0
        %v1133 = vadd.f32 0.0, %v1132
        %1134 = vmatmul.f32.gmra.mxu0 %v894
        %v1135 = vpop.f32.mrf.mxu0
        %v1136 = vadd.f32 0.0, %v1135
        %1137 = vmatmul.f32.gmra.mxu0 %v897
        %v1138 = vpop.f32.mrf.mxu0
        %v1139 = vadd.f32 0.0, %v1138
        %1140 = vmatmul.f32.gmra.mxu0 %v900
        %v1141 = vpop.f32.mrf.mxu0
        %v1142 = vadd.f32 0.0, %v1141
        %1143 = vmatmul.f32.gmra.mxu0 %v1077
        %v1144 = vpop.f32.mrf.mxu0
        %v1145 = vadd.f32 0.0, %v1144
        %1146 = vmatmul.f32.gmra.mxu0 %v1080
        %v1147 = vpop.f32.mrf.mxu0
        %v1148 = vadd.f32 0.0, %v1147
        %1149 = vdwg.mxu0
        %v1150 = vadd.f32 %v998, %v1103
        %v1151 = vadd.f32 %v1001, %v1106
        %v1152 = vadd.f32 %v1004, %v1109
        %v1153 = vadd.f32 %v1007, %v1112
        %v1154 = vadd.f32 %v1010, %v1115
        %v1155 = vadd.f32 %v1013, %v1118
        %v1156 = vadd.f32 %v1016, %v1121
        %v1157 = vadd.f32 %v1019, %v1124
        %v1158 = vadd.f32 %v1022, %v1127
        %v1159 = vadd.f32 %v1025, %v1130
        %v1160 = vadd.f32 %v1028, %v1133
        %v1161 = vadd.f32 %v1031, %v1136
        %v1162 = vadd.f32 %v1034, %v1139
        %v1163 = vadd.f32 %v1037, %v1142
        %v1164 = vadd.f32 %v1040, %v1145
        %v1165 = vadd.f32 %v1043, %v1148
        %v1166 = vld [vmem:[%s4] sm:$0x1]
        %v1168 = vperm.slane %v1166, 0
        %v1170 = vmul.f32 %v1150, %v1168
        %v1171 = vmul.f32 %v1151, %v1168
        %v1172 = vmul.f32 %v1152, %v1168
        %v1173 = vmul.f32 %v1153, %v1168
        %v1174 = vmul.f32 %v1154, %v1168
        %v1175 = vmul.f32 %v1155, %v1168
        %v1176 = vmul.f32 %v1156, %v1168
        %v1177 = vmul.f32 %v1157, %v1168
        %v1178 = vmul.f32 %v1158, %v1168
        %v1179 = vmul.f32 %v1159, %v1168
        %v1180 = vmul.f32 %v1160, %v1168
        %v1181 = vmul.f32 %v1161, %v1168
        %v1182 = vmul.f32 %v1162, %v1168
        %v1183 = vmul.f32 %v1163, %v1168
        %v1184 = vmul.f32 %v1164, %v1168
        %v1185 = vmul.f32 %v1165, %v1168
        %v1186 = vld [vmem:[%s5] sm:$0x1]
        %v1188 = vperm.slane %v1186, 0
        %v1190 = vadd.f32 %v1170, %v1188
        %v1191 = vadd.f32 %v1171, %v1188
        %v1192 = vadd.f32 %v1172, %v1188
        %v1193 = vadd.f32 %v1173, %v1188
        %v1194 = vadd.f32 %v1174, %v1188
        %v1195 = vadd.f32 %v1175, %v1188
        %v1196 = vadd.f32 %v1176, %v1188
        %v1197 = vadd.f32 %v1177, %v1188
        %v1198 = vadd.f32 %v1178, %v1188
        %v1199 = vadd.f32 %v1179, %v1188
        %v1200 = vadd.f32 %v1180, %v1188
        %v1201 = vadd.f32 %v1181, %v1188
        %v1202 = vadd.f32 %v1182, %v1188
        %v1203 = vadd.f32 %v1183, %v1188
        %v1204 = vadd.f32 %v1184, %v1188
        %v1205 = vadd.f32 %v1185, %v1188
        %vm1206 = vcmp.gt.f32.partialorder %v1190, 0.0
        %vm1207 = vcmp.gt.f32.partialorder %v1191, 0.0
        %vm1208 = vcmp.gt.f32.partialorder %v1192, 0.0
        %vm1209 = vcmp.gt.f32.partialorder %v1193, 0.0
        %vm1210 = vcmp.gt.f32.partialorder %v1194, 0.0
        %vm1211 = vcmp.gt.f32.partialorder %v1195, 0.0
        %vm1212 = vcmp.gt.f32.partialorder %v1196, 0.0
        %vm1213 = vcmp.gt.f32.partialorder %v1197, 0.0
        %vm1214 = vcmp.gt.f32.partialorder %v1198, 0.0
        %vm1215 = vcmp.gt.f32.partialorder %v1199, 0.0
        %vm1216 = vcmp.gt.f32.partialorder %v1200, 0.0
        %vm1217 = vcmp.gt.f32.partialorder %v1201, 0.0
        %vm1218 = vcmp.gt.f32.partialorder %v1202, 0.0
        %vm1219 = vcmp.gt.f32.partialorder %v1203, 0.0
        %vm1220 = vcmp.gt.f32.partialorder %v1204, 0.0
        %vm1221 = vcmp.gt.f32.partialorder %v1205, 0.0
        %v1222 = vmul.f32 %v1190, 0.01
        %v1223 = vmul.f32 %v1191, 0.01
        %v1224 = vmul.f32 %v1192, 0.01
        %v1225 = vmul.f32 %v1193, 0.01
        %v1226 = vmul.f32 %v1194, 0.01
        %v1227 = vmul.f32 %v1195, 0.01
        %v1228 = vmul.f32 %v1196, 0.01
        %v1229 = vmul.f32 %v1197, 0.01
        %v1230 = vmul.f32 %v1198, 0.01
        %v1231 = vmul.f32 %v1199, 0.01
        %v1232 = vmul.f32 %v1200, 0.01
        %v1233 = vmul.f32 %v1201, 0.01
        %v1234 = vmul.f32 %v1202, 0.01
        %v1235 = vmul.f32 %v1203, 0.01
        %v1236 = vmul.f32 %v1204, 0.01
        %v1237 = vmul.f32 %v1205, 0.01
        %v1238 = vsel %vm1206, %v1190, %v1222
        %v1239 = vsel %vm1207, %v1191, %v1223
        %v1240 = vsel %vm1208, %v1192, %v1224
        %v1241 = vsel %vm1209, %v1193, %v1225
        %v1242 = vsel %vm1210, %v1194, %v1226
        %v1243 = vsel %vm1211, %v1195, %v1227
        %v1244 = vsel %vm1212, %v1196, %v1228
        %v1245 = vsel %vm1213, %v1197, %v1229
        %v1246 = vsel %vm1214, %v1198, %v1230
        %v1247 = vsel %vm1215, %v1199, %v1231
        %v1248 = vsel %vm1216, %v1200, %v1232
        %v1249 = vsel %vm1217, %v1201, %v1233
        %v1250 = vsel %vm1218, %v1202, %v1234
        %v1251 = vsel %vm1219, %v1203, %v1235
        %v1252 = vsel %vm1220, %v1204, %v1236
        %v1253 = vsel %vm1221, %v1205, %v1237
        %1254 = vst.msk [vmem:[%s457] sm:$0xff] %vm803, %v1238
        %1255 = vst.msk [vmem:[%s457 + $0x8] sm:$0xff] %vm803, %v1239
        %1256 = vst.msk [vmem:[%s457 + $0x10] sm:$0xff] %vm803, %v1240
        %1257 = vst.msk [vmem:[%s457 + $0x18] sm:$0xff] %vm803, %v1241
        %1258 = vst.msk [vmem:[%s457 + $0x20] sm:$0xff] %vm803, %v1242
        %1259 = vst.msk [vmem:[%s457 + $0x28] sm:$0xff] %vm803, %v1243
        %1260 = vst.msk [vmem:[%s457 + $0x30] sm:$0xff] %vm803, %v1244
        %1261 = vst.msk [vmem:[%s457 + $0x38] sm:$0xff] %vm803, %v1245
        %1262 = vst.msk [vmem:[%s457 + $0x40] sm:$0xff] %vm803, %v1246
        %1263 = vst.msk [vmem:[%s457 + $0x48] sm:$0xff] %vm803, %v1247
        %1264 = vst.msk [vmem:[%s457 + $0x50] sm:$0xff] %vm803, %v1248
        %1265 = vst.msk [vmem:[%s457 + $0x58] sm:$0xff] %vm803, %v1249
        %1266 = vst.msk [vmem:[%s457 + $0x60] sm:$0xff] %vm803, %v1250
        %1267 = vst.msk [vmem:[%s457 + $0x68] sm:$0xff] %vm803, %v1251
        %1268 = vst.msk [vmem:[%s457 + $0x70] sm:$0xff] %vm803, %v1252
        %1269 = vst.msk [vmem:[%s457 + $0x78] sm:$0xff] %vm803, %v1253
        %v1270 = vsel %vm803, %v1238, 0.0
        %v1271 = vsel %vm803, %v1239, 0.0
        %v1272 = vadd.f32 %v1270, %v1271
        %v1273 = vsel %vm803, %v1240, 0.0
        %v1274 = vadd.f32 %v1272, %v1273
        %v1275 = vsel %vm803, %v1241, 0.0
        %v1276 = vadd.f32 %v1274, %v1275
        %v1277 = vsel %vm803, %v1242, 0.0
        %v1278 = vadd.f32 %v1276, %v1277
        %v1279 = vsel %vm803, %v1243, 0.0
        %v1280 = vadd.f32 %v1278, %v1279
        %v1281 = vsel %vm803, %v1244, 0.0
        %v1282 = vadd.f32 %v1280, %v1281
        %v1283 = vsel %vm803, %v1245, 0.0
        %v1284 = vadd.f32 %v1282, %v1283
        %v1285 = vsel %vm803, %v1246, 0.0
        %v1286 = vadd.f32 %v1284, %v1285
        %v1287 = vsel %vm803, %v1247, 0.0
        %v1288 = vadd.f32 %v1286, %v1287
        %v1289 = vsel %vm803, %v1248, 0.0
        %v1290 = vadd.f32 %v1288, %v1289
        %v1291 = vsel %vm803, %v1249, 0.0
        %v1292 = vadd.f32 %v1290, %v1291
        %v1293 = vsel %vm803, %v1250, 0.0
        %v1294 = vadd.f32 %v1292, %v1293
        %v1295 = vsel %vm803, %v1251, 0.0
        %v1296 = vadd.f32 %v1294, %v1295
        %v1297 = vsel %vm803, %v1252, 0.0
        %v1298 = vadd.f32 %v1296, %v1297
        %v1299 = vsel %vm803, %v1253, 0.0
        %v1300 = vadd.f32 %v1298, %v1299
        %v1301 = vrot.slane %v1300, 4
        %v1302 = vadd.f32 %v1300, %v1301
        %v1303 = vrot.slane %v1302, 2
        %v1304 = vadd.f32 %v1302, %v1303
        %v1305 = vrot.slane %v1304, 1
        %v1306 = vadd.f32 %v1304, %v1305
        %vm1307 = vcmask 57344
        %1308 = vst.msk [vmem:[%s402] sm:$0x1] %vm1307, %v1306
        %s1309 = smul.u32 8, %s27
        %p1310 = scmp.lt.s32.totalorder %s26, 1
        %s1311 = scalar_select %p1310, %s26, 1
        %p1312 = scmp.lt.s32.totalorder %s1309, 15
        %s1313 = scalar_select %p1312, %s1309, 15
        %s1314 = smul.addr %s1313, 2
        %s1315 = smul.addr %s1311, 32
        %s1316 = sadd.s32 %s1314, %s1315
        %s1317 = smul.addr %s1316, 8
        %s1318 = scalar_lea.vmem %s6, %s1317
        %s1319 = sand.u32 %s235, 1
        %s1320 = scalar_lea.sflag [#allocation3], %s1319
        %s1321 = sand.u32 %s235, 1
        %s1322 = scalar_lea.vmem [#allocation2], %s1321
        // Predicated region
        $region45: #{tpu_custom_call.1} parent=43 // pred_check
          %p1323 = pneg %p217
        $region46: #{tpu_custom_call.1} parent=43 // pred_check_branch
          %1325 = sbr.rel (%p1323) target = $region48
        $region47: #{tpu_custom_call.1} parent=43 // pred_region
          %s1326 = smul.u32 8, %s27
        $region48: #{tpu_custom_call.1} parent=43 // pred_fallthru
          _
        // Predicated region
        $region49: #{tpu_custom_call.1} parent=43 // pred_check
          %p1327 = pneg %p245
        $region50: #{tpu_custom_call.1} parent=43 // pred_check_branch
          %1329 = sbr.rel (%p1327) target = $region52
        $region51: #{tpu_custom_call.1} parent=43 // pred_region
          %1331 = vsyncadd %s1320, 0
          %s1332 = smul.addr %s26, 2
          %s1333 = sadd.s32 %s27, %s1332
          %s1334 = scalar_lea.hbm %s7, %s1333
          %s1336 = sshll.u32 %s1322, 4
          %s1337 = int_to_ptr.vmem [resolvable:$true] %s1336
          %s1338 = sshll.u32 %s1334, 4
          %s1339 = int_to_ptr.hbm [resolvable:$true] %s1338
          %1341 = dma.vmem_to_hbm [thread:$0]  %s1337, 16, %s1339, %s1320
        $region52: #{tpu_custom_call.1} parent=43 // pred_fallthru
          _
      $region44: #{tpu_custom_call.1} parent=5 // pred_fallthru
        _
      %p1342 = scmp.le.s32.totalorder 2, %s17
      // Predicated region
      $region53: #{tpu_custom_call.1} parent=5 // pred_check
        %p1343 = pneg %p1342
      $region54: #{tpu_custom_call.1} parent=5 // pred_check_branch
        %1345 = sbr.rel (%p1343) target = $region56
      $region55: #{tpu_custom_call.1} parent=5 // pred_region
        %s1346 = ssub.s32 %s17, 2
        // Predicated region
        $region57: #{tpu_custom_call.1} parent=55 // pred_check
          %p1347 = pneg %p223
        $region58: #{tpu_custom_call.1} parent=55 // pred_check_branch
          %1349 = sbr.rel (%p1347) target = $region60
        $region59: #{tpu_custom_call.1} parent=55 // pred_region
          %s1350 = smul.u32 8, %s29
          %p1351 = scmp.lt.s32.totalorder %s28, 1
          %s1352 = scalar_select %p1351, %s28, 1
          %p1353 = scmp.lt.s32.totalorder %s1350, 15
          %s1354 = scalar_select %p1353, %s1350, 15
          %s1355 = smul.addr %s1354, 2
          %s1356 = smul.addr %s1352, 32
          %s1357 = sadd.s32 %s1355, %s1356
          %s1358 = smul.addr %s1357, 8
          %s1359 = scalar_lea.vmem %s6, %s1358
        $region60: #{tpu_custom_call.1} parent=55 // pred_fallthru
          _
        // Predicated region
        $region61: #{tpu_custom_call.1} parent=55 // pred_check
          %p1360 = pneg %p251
        $region62: #{tpu_custom_call.1} parent=55 // pred_check_branch
          %1362 = sbr.rel (%p1360) target = $region64
        $region63: #{tpu_custom_call.1} parent=55 // pred_region
          %s1363 = sand.u32 %s236, 1
          %s1364 = scalar_lea.sflag [#allocation3], %s1363
          %s1365 = sand.u32 %s236, 1
          %s1366 = scalar_lea.vmem [#allocation2], %s1365
          %1368 = dma.done %s1364, 16
        $region64: #{tpu_custom_call.1} parent=55 // pred_fallthru
          _
      $region56: #{tpu_custom_call.1} parent=5 // pred_fallthru
        _
    $region6: #{tpu_custom_call.1} parent=1 // loop_footer
      %s21 = sadd.s32 1, %s17
    $region7: #{tpu_custom_call.1} parent=1 // loop_footer_branch
      %16 = sbr.rel target = $region3
    $region8: #{tpu_custom_call.1} parent=1 // loop_exit
      _
    %1369 = vsyncpa [#allocation3], 1
    %s1370 = scalar_lea.sflag [#allocation3], 1
    %1371 = vsyncpa %s1370, 1

</llo_original>
